<compile_context>
chip_gen: v6e
topology: v6e:2x2x1
jax: 0.10.0
libtpu: 0.0.40
codegen_flags: <defaults>
</compile_context>

<pallas_src>
import functools

import numpy as np

import jax
import jax.numpy as jnp
from jax import lax
from jax.experimental import pallas as pl
from jax.experimental.pallas import tpu as pltpu

EPS = 1e-5
VOCAB = 37
OUT_PAD = 128          # lane-dense padded head width (wrapper slices [:, :37])


def _pad8(n):
    return ((n + 7) // 8) * 8


def _mm(a, b):
    """2-D matmul with bf16 operands and f32 accumulation (MXU)."""
    return jnp.dot(a.astype(jnp.bfloat16), b.astype(jnp.bfloat16),
                   preferred_element_type=jnp.float32)


def _model_kernel(counts, leaky_a, *refs):
    # refs: idx_a (M0p,1) i32 | idx_b (M0p,1) i32 (pre-offset by 37)
    #       whT_pad (H,128) bf16 | bh_pad (1,128) f32
    #       then 5 layers x (S, Wcat, gamma, beta) | out (Mh_pad,128) f32
    idxa_ref, idxb_ref, whT_ref, bh_ref = refs[0:4]
    layer_refs = refs[4:-1]
    o_ref = refs[-1]

    # Paired one-hot for the fused (embedding + conv1-tap) channel matmul:
    # lane j = 1 iff j == idx[row]  (j < 37)  or  j == 37 + idx[row+1].
    m0 = idxa_ref.shape[0]
    classes = lax.broadcasted_iota(jnp.int32, (m0, 2 * VOCAB), 1)
    hit = (classes == idxa_ref[...]) | (classes == idxb_ref[...])
    xcat = jnp.where(hit, 1.0, 0.0).astype(jnp.bfloat16)

    x = None
    for li in range(5):
        s_ref, w_ref, g_ref, b_ref = layer_refs[4 * li: 4 * li + 4]

        z = _mm(xcat, w_ref[...])           # (rows_in, C)  fused-tap channel matmul
        y = _mm(s_ref[...], z)              # (rows_out, C) window-start row pick
        c = y.shape[1]

        # BatchNorm (training mode): fused mean / E[x^2] reduction over the
        # lane-concatenated [y | y*y], then a single scale/offset.  Padded rows
        # of y are exact zeros; divide by the true element count.
        inv_n = 1.0 / float(counts[li])
        stats = jnp.sum(jnp.concatenate([y, y * y], axis=1),
                        axis=0, keepdims=True) * inv_n          # (1, 2C)
        mean = stats[:, :c]
        var = jnp.maximum(stats[:, c:] - mean * mean, 0.0)
        scale = g_ref[...] * lax.rsqrt(var + EPS)
        offset = b_ref[...] - mean * scale
        ybn = y * scale + offset

        x = jnp.where(ybn > 0, ybn, leaky_a * ybn) if li == 0 else jnp.tanh(ybn)

        if li < 4:
            # Pair each row with the next one (always in the same batch segment
            # for every row the next selection picks) so the two conv taps fuse
            # into one MXU pass next iteration.  Kept in f32 (plain sublane roll).
            x_next = pltpu.roll(x, shift=x.shape[0] - 1, axis=0)   # row m -> x[m+1]
            xcat = jnp.concatenate([x, x_next], axis=1)

    # Head linear, (8k, 128) lane-dense store; wrapper slices to (B, 37).
    o_ref[...] = _mm(x, whT_ref[...]) + bh_ref[...]


def init_params(key, n_embd, l1_n, l2_n, l3_n, l4_n, head_n):
    ks = jax.random.split(key, 8)
    f32 = jnp.float32

    def kaiming_normal(k, shape, fan_in):
        return jax.random.normal(k, shape, dtype=f32) * jnp.sqrt(2.0 / fan_in)

    def xavier_uniform(k, shape, fan_in, fan_out):
        lim = jnp.sqrt(6.0 / (fan_in + fan_out))
        return jax.random.uniform(k, shape, dtype=f32, minval=-lim, maxval=lim)

    p = {}
    p['emb'] = kaiming_normal(ks[0], (37, n_embd), n_embd)
    p['w1'] = kaiming_normal(ks[1], (l1_n, n_embd, 2), n_embd * 2)
    p['w2'] = xavier_uniform(ks[2], (l2_n, l1_n, 2), l1_n * 2, l2_n * 2)
    p['w3'] = xavier_uniform(ks[3], (l3_n, l2_n, 2), l2_n * 2, l3_n * 2)
    p['w4'] = xavier_uniform(ks[4], (l4_n, l3_n, 2), l3_n * 2, l4_n * 2)
    p['w5'] = xavier_uniform(ks[5], (head_n, 2 * l4_n), 2 * l4_n, head_n)
    p['wh'] = xavier_uniform(ks[6], (37, head_n), head_n, 37)
    lim = 1.0 / jnp.sqrt(float(head_n))
    p['bh'] = jax.random.uniform(ks[7], (37,), dtype=f32, minval=-lim, maxval=lim)
    # Conv / l5 biases omitted: training-mode BN's mean subtraction cancels any
    # additive per-channel pre-BN bias exactly.
    for name, c in (('1', l1_n), ('2', l2_n), ('3', l3_n), ('4', l4_n), ('5', head_n)):
        p['g' + name] = jnp.ones((c,), f32)
        p['be' + name] = jnp.zeros((c,), f32)
    return p


def model_forward(params, idx, leaky_relu_a):
    B, L = idx.shape
    f32, bf16 = jnp.float32, jnp.bfloat16

    # Conv-stack lengths (kernel 2; strides 1,2,1,2); Flatten feeds Linear(2*l4_n).
    l1 = L - 1
    l2 = (l1 - 2) // 2 + 1
    l3 = l2 - 1
    l4 = (l3 - 2) // 2 + 1
    assert l4 == 2, "sequence length must reduce to 2 before Flatten/Linear(2*l4_n)"

    def sel_matrix(lin, lout, stride):
        """0/1 window-start row-selection matrix, rows/cols padded to x8."""
        s = np.zeros((_pad8(B * lout), _pad8(B * lin)), np.float32)
        for b in range(B):
            for t in range(lout):
                s[b * lout + t, b * lin + stride * t] = 1.0
        return jnp.asarray(s, dtype=bf16)

    def tapcat(w):                      # (Cout, Cin, 2) -> (2*Cin, Cout)
        return jnp.concatenate([w[:, :, 0].T, w[:, :, 1].T], axis=0)

    emb, w1, w5 = params['emb'], params['w1'], params['w5']
    head_n = w5.shape[0]
    # Fold the embedding table into conv1's taps (exact linear reassociation).
    wcat1 = jnp.concatenate([emb @ w1[:, :, 0].T, emb @ w1[:, :, 1].T], axis=0)
    # PyTorch Flatten of (B, C, L=2): column = c*2 + l, so even/odd cols = taps.
    wcat5 = jnp.concatenate([w5[:, 0::2].T, w5[:, 1::2].T], axis=0)

    whT_pad = jnp.zeros((head_n, OUT_PAD), f32).at[:, :VOCAB].set(params['wh'].T).astype(bf16)
    bh_pad = jnp.zeros((1, OUT_PAD), f32).at[:, :VOCAB].set(params['bh'][None, :])

    # Paired token indices (idx[m], idx[m+1]); the +1 column is only consumed
    # for rows the layer-1 selection keeps, so the end-of-batch wrap is harmless.
    m0p = _pad8(B * L)
    pad = m0p - B * L
    idx_flat = idx.reshape(B * L).astype(jnp.int32)
    idx_next = jnp.concatenate([idx_flat[1:], idx_flat[:1]])
    idx_a = jnp.pad(idx_flat, (0, pad)).reshape(m0p, 1)
    idx_b = (jnp.pad(idx_next, (0, pad)) + VOCAB).reshape(m0p, 1)

    layer_cfg = [
        (L,  l1, 1, wcat1,                'g1', 'be1'),
        (l1, l2, 2, tapcat(params['w2']), 'g2', 'be2'),
        (l2, l3, 1, tapcat(params['w3']), 'g3', 'be3'),
        (l3, l4, 2, tapcat(params['w4']), 'g4', 'be4'),
        (l4, 1,  2, wcat5,                'g5', 'be5'),   # Flatten + Linear l5
    ]

    inputs = [idx_a, idx_b, whT_pad, bh_pad]
    counts, flops, transcend = [], 0, 0
    for (lin, lout, stride, wcat, gk, bk) in layer_cfg:
        s = sel_matrix(lin, lout, stride)
        cout = wcat.shape[1]
        inputs += [s, wcat.astype(bf16),
                   params[gk].reshape(1, -1).astype(f32),
                   params[bk].reshape(1, -1).astype(f32)]
        counts.append(B * lout)                       # true BN element count
        rows_out, rows_in = s.shape
        flops += 2 * rows_in * wcat.shape[0] * cout   # channel matmul
        flops += 2 * rows_out * rows_in * cout        # selection matmul
        transcend += rows_out * cout + cout           # tanh / leaky + rsqrt

    mh_pad = _pad8(B)
    flops += 2 * mh_pad * head_n * OUT_PAD            # head matmul
    bytes_accessed = sum(int(a.size) * a.dtype.itemsize for a in inputs)
    bytes_accessed += mh_pad * OUT_PAD * 4

    kernel = functools.partial(_model_kernel, tuple(counts), float(leaky_relu_a))
    out = pl.pallas_call(
        kernel,
        out_shape=jax.ShapeDtypeStruct((mh_pad, OUT_PAD), f32),
        in_specs=[pl.BlockSpec(memory_space=pltpu.MemorySpace.VMEM)] * len(inputs),
        out_specs=pl.BlockSpec(memory_space=pltpu.MemorySpace.VMEM),
        compiler_params=pltpu.CompilerParams(vmem_limit_bytes=32 * 1024 * 1024),
        cost_estimate=pl.CostEstimate(flops=int(flops),
                                      transcendentals=int(transcend),
                                      bytes_accessed=int(bytes_accessed)),
    )(*inputs)
    return out[:B, :VOCAB]


if __name__ == "__main__":
    key = jax.random.PRNGKey(0)
    pkey, xkey = jax.random.split(key)

    # Small, self-consistent shapes: seq len 12 -> conv lengths 11, 5, 4, 2,
    # so Flatten feeds Linear(2 * l4_n, head_n) exactly as the module expects.
    B, L = 2, 12
    cfg = dict(n_embd=16, l1_n=32, l2_n=32, l3_n=32, l4_n=32, head_n=32)
    leaky_relu_a = 0.1

    params = init_params(pkey, **cfg)
    idx = jax.random.randint(xkey, (B, L), 0, 37, dtype=jnp.int32)

    out = model_forward(params, idx, leaky_relu_a)
    out = jax.block_until_ready(out)
    assert out.shape == (B, 37), out.shape
    assert bool(jnp.all(jnp.isfinite(out)))
    print("KERNEL_OK")
</pallas_src>

<mosaic_0001>
module attributes {stable_mosaic.version = 11 : i64} {
  func.func @_model_kernel(%arg0: memref<24x1xi32, #tpu.memory_space<vmem>>, %arg1: memref<24x1xi32, #tpu.memory_space<vmem>>, %arg2: memref<32x128xbf16, #tpu.memory_space<vmem>>, %arg3: memref<1x128xf32, #tpu.memory_space<vmem>>, %arg4: memref<24x24xbf16, #tpu.memory_space<vmem>>, %arg5: memref<74x32xbf16, #tpu.memory_space<vmem>>, %arg6: memref<1x32xf32, #tpu.memory_space<vmem>>, %arg7: memref<1x32xf32, #tpu.memory_space<vmem>>, %arg8: memref<16x24xbf16, #tpu.memory_space<vmem>>, %arg9: memref<64x32xbf16, #tpu.memory_space<vmem>>, %arg10: memref<1x32xf32, #tpu.memory_space<vmem>>, %arg11: memref<1x32xf32, #tpu.memory_space<vmem>>, %arg12: memref<8x16xbf16, #tpu.memory_space<vmem>>, %arg13: memref<64x32xbf16, #tpu.memory_space<vmem>>, %arg14: memref<1x32xf32, #tpu.memory_space<vmem>>, %arg15: memref<1x32xf32, #tpu.memory_space<vmem>>, %arg16: memref<8x8xbf16, #tpu.memory_space<vmem>>, %arg17: memref<64x32xbf16, #tpu.memory_space<vmem>>, %arg18: memref<1x32xf32, #tpu.memory_space<vmem>>, %arg19: memref<1x32xf32, #tpu.memory_space<vmem>>, %arg20: memref<8x8xbf16, #tpu.memory_space<vmem>>, %arg21: memref<64x32xbf16, #tpu.memory_space<vmem>>, %arg22: memref<1x32xf32, #tpu.memory_space<vmem>>, %arg23: memref<1x32xf32, #tpu.memory_space<vmem>>, %arg24: memref<8x128xf32, #tpu.memory_space<vmem>>) attributes {dimension_semantics = [], scalar_prefetch = 0 : i64, scratch_operands = 0 : i64, tpu.core_type = #tpu.core_type<tc>} {
    %0 = tpu.iota {dimensions = array<i32: 1>} : vector<24x74xi32>
    %c0 = arith.constant 0 : index
    %c0_0 = arith.constant 0 : index
    %1 = vector.load %arg0[%c0, %c0_0] : memref<24x1xi32, #tpu.memory_space<vmem>>, vector<24x1xi32>
    %2 = vector.broadcast %1 : vector<24x1xi32> to vector<24x74xi32>
    %3 = arith.cmpi eq, %0, %2 : vector<24x74xi32>
    %c0_1 = arith.constant 0 : index
    %c0_2 = arith.constant 0 : index
    %4 = vector.load %arg1[%c0_1, %c0_2] : memref<24x1xi32, #tpu.memory_space<vmem>>, vector<24x1xi32>
    %5 = vector.broadcast %4 : vector<24x1xi32> to vector<24x74xi32>
    %6 = arith.cmpi eq, %0, %5 : vector<24x74xi32>
    %7 = arith.ori %3, %6 : vector<24x74xi1>
    %cst = arith.constant 1.000000e+00 : f32
    %cst_3 = arith.constant 0.000000e+00 : f32
    %8 = vector.broadcast %cst : f32 to vector<24x74xf32>
    %9 = vector.broadcast %cst_3 : f32 to vector<24x74xf32>
    %10 = arith.select %7, %8, %9 : vector<24x74xi1>, vector<24x74xf32>
    %11 = arith.truncf %10 : vector<24x74xf32> to vector<24x74xbf16>
    %c0_4 = arith.constant 0 : index
    %c0_5 = arith.constant 0 : index
    %12 = vector.load %arg5[%c0_4, %c0_5] : memref<74x32xbf16, #tpu.memory_space<vmem>>, vector<74x32xbf16>
    %cst_6 = arith.constant dense<0.000000e+00> : vector<24x32xf32>
    %13 = tpu.matmul %11, %12, %cst_6 {dimension_numbers = #tpu.dot_dimension_numbers<[1], [0], [0], [1], [0, 0, 1, 1], [], []>} : vector<24x74xbf16>, vector<74x32xbf16>, vector<24x32xf32> -> vector<24x32xf32>
    %c0_7 = arith.constant 0 : index
    %c0_8 = arith.constant 0 : index
    %14 = vector.load %arg4[%c0_7, %c0_8] : memref<24x24xbf16, #tpu.memory_space<vmem>>, vector<24x24xbf16>
    %15 = arith.truncf %13 : vector<24x32xf32> to vector<24x32xbf16>
    %cst_9 = arith.constant dense<0.000000e+00> : vector<24x32xf32>
    %16 = tpu.matmul %14, %15, %cst_9 {dimension_numbers = #tpu.dot_dimension_numbers<[1], [0], [0], [1], [0, 0, 1, 1], [], []>} : vector<24x24xbf16>, vector<24x32xbf16>, vector<24x32xf32> -> vector<24x32xf32>
    %17 = arith.mulf %16, %16 : vector<24x32xf32>
    %18 = tpu.concatenate %16, %17 in 1 : vector<24x32xf32>, vector<24x32xf32> -> vector<24x64xf32>
    %cst_10 = arith.constant dense<0.000000e+00> : vector<64xf32>
    %19 = vector.multi_reduction <add>, %18, %cst_10 [0] : vector<24x64xf32> to vector<64xf32>
    %20 = vector.shape_cast %19 : vector<64xf32> to vector<1x64xf32>
    %cst_11 = arith.constant 0.0454545468 : f32
    %21 = vector.broadcast %cst_11 : f32 to vector<1x64xf32>
    %22 = arith.mulf %20, %21 : vector<1x64xf32>
    %23 = vector.extract_strided_slice %22 {offsets = [0, 0], sizes = [1, 32], strides = [1, 1]} : vector<1x64xf32> to vector<1x32xf32>
    %24 = vector.extract_strided_slice %22 {offsets = [0, 32], sizes = [1, 32], strides = [1, 1]} : vector<1x64xf32> to vector<1x32xf32>
    %25 = arith.mulf %23, %23 : vector<1x32xf32>
    %26 = arith.subf %24, %25 : vector<1x32xf32>
    %cst_12 = arith.constant 0.000000e+00 : f32
    %27 = vector.broadcast %cst_12 : f32 to vector<1x32xf32>
    %28 = arith.maximumf %26, %27 : vector<1x32xf32>
    %c0_13 = arith.constant 0 : index
    %c0_14 = arith.constant 0 : index
    %29 = vector.load %arg6[%c0_13, %c0_14] : memref<1x32xf32, #tpu.memory_space<vmem>>, vector<1x32xf32>
    %cst_15 = arith.constant 9.99999974E-6 : f32
    %30 = vector.broadcast %cst_15 : f32 to vector<1x32xf32>
    %31 = arith.addf %28, %30 : vector<1x32xf32>
    %32 = math.rsqrt %31 : vector<1x32xf32>
    %33 = arith.mulf %29, %32 : vector<1x32xf32>
    %c0_16 = arith.constant 0 : index
    %c0_17 = arith.constant 0 : index
    %34 = vector.load %arg7[%c0_16, %c0_17] : memref<1x32xf32, #tpu.memory_space<vmem>>, vector<1x32xf32>
    %35 = arith.mulf %23, %33 : vector<1x32xf32>
    %36 = arith.subf %34, %35 : vector<1x32xf32>
    %37 = vector.broadcast %33 : vector<1x32xf32> to vector<24x32xf32>
    %38 = arith.mulf %16, %37 : vector<24x32xf32>
    %39 = vector.broadcast %36 : vector<1x32xf32> to vector<24x32xf32>
    %40 = arith.addf %38, %39 : vector<24x32xf32>
    %cst_18 = arith.constant 0.000000e+00 : f32
    %41 = vector.broadcast %cst_18 : f32 to vector<24x32xf32>
    %42 = arith.cmpf ogt, %40, %41 : vector<24x32xf32>
    %cst_19 = arith.constant 1.000000e-01 : f32
    %43 = vector.broadcast %cst_19 : f32 to vector<24x32xf32>
    %44 = arith.mulf %43, %40 : vector<24x32xf32>
    %45 = arith.select %42, %40, %44 : vector<24x32xi1>, vector<24x32xf32>
    %c23_i32 = arith.constant 23 : i32
    %46 = tpu.dynamic_rotate %45 by %c23_i32 dim 0 : vector<24x32xf32>, i32 -> vector<24x32xf32>
    %47 = tpu.concatenate %45, %46 in 1 : vector<24x32xf32>, vector<24x32xf32> -> vector<24x64xf32>
    %c0_20 = arith.constant 0 : index
    %c0_21 = arith.constant 0 : index
    %48 = vector.load %arg9[%c0_20, %c0_21] : memref<64x32xbf16, #tpu.memory_space<vmem>>, vector<64x32xbf16>
    %49 = arith.truncf %47 : vector<24x64xf32> to vector<24x64xbf16>
    %cst_22 = arith.constant dense<0.000000e+00> : vector<24x32xf32>
    %50 = tpu.matmul %49, %48, %cst_22 {dimension_numbers = #tpu.dot_dimension_numbers<[1], [0], [0], [1], [0, 0, 1, 1], [], []>} : vector<24x64xbf16>, vector<64x32xbf16>, vector<24x32xf32> -> vector<24x32xf32>
    %c0_23 = arith.constant 0 : index
    %c0_24 = arith.constant 0 : index
    %51 = vector.load %arg8[%c0_23, %c0_24] : memref<16x24xbf16, #tpu.memory_space<vmem>>, vector<16x24xbf16>
    %52 = arith.truncf %50 : vector<24x32xf32> to vector<24x32xbf16>
    %cst_25 = arith.constant dense<0.000000e+00> : vector<16x32xf32>
    %53 = tpu.matmul %51, %52, %cst_25 {dimension_numbers = #tpu.dot_dimension_numbers<[1], [0], [0], [1], [0, 0, 1, 1], [], []>} : vector<16x24xbf16>, vector<24x32xbf16>, vector<16x32xf32> -> vector<16x32xf32>
    %54 = arith.mulf %53, %53 : vector<16x32xf32>
    %55 = tpu.concatenate %53, %54 in 1 : vector<16x32xf32>, vector<16x32xf32> -> vector<16x64xf32>
    %cst_26 = arith.constant dense<0.000000e+00> : vector<64xf32>
    %56 = vector.multi_reduction <add>, %55, %cst_26 [0] : vector<16x64xf32> to vector<64xf32>
    %57 = vector.shape_cast %56 : vector<64xf32> to vector<1x64xf32>
    %cst_27 = arith.constant 1.000000e-01 : f32
    %58 = vector.broadcast %cst_27 : f32 to vector<1x64xf32>
    %59 = arith.mulf %57, %58 : vector<1x64xf32>
    %60 = vector.extract_strided_slice %59 {offsets = [0, 0], sizes = [1, 32], strides = [1, 1]} : vector<1x64xf32> to vector<1x32xf32>
    %61 = vector.extract_strided_slice %59 {offsets = [0, 32], sizes = [1, 32], strides = [1, 1]} : vector<1x64xf32> to vector<1x32xf32>
    %62 = arith.mulf %60, %60 : vector<1x32xf32>
    %63 = arith.subf %61, %62 : vector<1x32xf32>
    %cst_28 = arith.constant 0.000000e+00 : f32
    %64 = vector.broadcast %cst_28 : f32 to vector<1x32xf32>
    %65 = arith.maximumf %63, %64 : vector<1x32xf32>
    %c0_29 = arith.constant 0 : index
    %c0_30 = arith.constant 0 : index
    %66 = vector.load %arg10[%c0_29, %c0_30] : memref<1x32xf32, #tpu.memory_space<vmem>>, vector<1x32xf32>
    %cst_31 = arith.constant 9.99999974E-6 : f32
    %67 = vector.broadcast %cst_31 : f32 to vector<1x32xf32>
    %68 = arith.addf %65, %67 : vector<1x32xf32>
    %69 = math.rsqrt %68 : vector<1x32xf32>
    %70 = arith.mulf %66, %69 : vector<1x32xf32>
    %c0_32 = arith.constant 0 : index
    %c0_33 = arith.constant 0 : index
    %71 = vector.load %arg11[%c0_32, %c0_33] : memref<1x32xf32, #tpu.memory_space<vmem>>, vector<1x32xf32>
    %72 = arith.mulf %60, %70 : vector<1x32xf32>
    %73 = arith.subf %71, %72 : vector<1x32xf32>
    %74 = vector.broadcast %70 : vector<1x32xf32> to vector<16x32xf32>
    %75 = arith.mulf %53, %74 : vector<16x32xf32>
    %76 = vector.broadcast %73 : vector<1x32xf32> to vector<16x32xf32>
    %77 = arith.addf %75, %76 : vector<16x32xf32>
    %78 = math.tanh %77 : vector<16x32xf32>
    %c15_i32 = arith.constant 15 : i32
    %79 = tpu.dynamic_rotate %78 by %c15_i32 dim 0 : vector<16x32xf32>, i32 -> vector<16x32xf32>
    %80 = tpu.concatenate %78, %79 in 1 : vector<16x32xf32>, vector<16x32xf32> -> vector<16x64xf32>
    %c0_34 = arith.constant 0 : index
    %c0_35 = arith.constant 0 : index
    %81 = vector.load %arg13[%c0_34, %c0_35] : memref<64x32xbf16, #tpu.memory_space<vmem>>, vector<64x32xbf16>
    %82 = arith.truncf %80 : vector<16x64xf32> to vector<16x64xbf16>
    %cst_36 = arith.constant dense<0.000000e+00> : vector<16x32xf32>
    %83 = tpu.matmul %82, %81, %cst_36 {dimension_numbers = #tpu.dot_dimension_numbers<[1], [0], [0], [1], [0, 0, 1, 1], [], []>} : vector<16x64xbf16>, vector<64x32xbf16>, vector<16x32xf32> -> vector<16x32xf32>
    %c0_37 = arith.constant 0 : index
    %c0_38 = arith.constant 0 : index
    %84 = vector.load %arg12[%c0_37, %c0_38] : memref<8x16xbf16, #tpu.memory_space<vmem>>, vector<8x16xbf16>
    %85 = arith.truncf %83 : vector<16x32xf32> to vector<16x32xbf16>
    %cst_39 = arith.constant dense<0.000000e+00> : vector<8x32xf32>
    %86 = tpu.matmul %84, %85, %cst_39 {dimension_numbers = #tpu.dot_dimension_numbers<[1], [0], [0], [1], [0, 0, 1, 1], [], []>} : vector<8x16xbf16>, vector<16x32xbf16>, vector<8x32xf32> -> vector<8x32xf32>
    %87 = arith.mulf %86, %86 : vector<8x32xf32>
    %88 = tpu.concatenate %86, %87 in 1 : vector<8x32xf32>, vector<8x32xf32> -> vector<8x64xf32>
    %cst_40 = arith.constant dense<0.000000e+00> : vector<64xf32>
    %89 = vector.multi_reduction <add>, %88, %cst_40 [0] : vector<8x64xf32> to vector<64xf32>
    %90 = vector.shape_cast %89 : vector<64xf32> to vector<1x64xf32>
    %cst_41 = arith.constant 1.250000e-01 : f32
    %91 = vector.broadcast %cst_41 : f32 to vector<1x64xf32>
    %92 = arith.mulf %90, %91 : vector<1x64xf32>
    %93 = vector.extract_strided_slice %92 {offsets = [0, 0], sizes = [1, 32], strides = [1, 1]} : vector<1x64xf32> to vector<1x32xf32>
    %94 = vector.extract_strided_slice %92 {offsets = [0, 32], sizes = [1, 32], strides = [1, 1]} : vector<1x64xf32> to vector<1x32xf32>
    %95 = arith.mulf %93, %93 : vector<1x32xf32>
    %96 = arith.subf %94, %95 : vector<1x32xf32>
    %cst_42 = arith.constant 0.000000e+00 : f32
    %97 = vector.broadcast %cst_42 : f32 to vector<1x32xf32>
    %98 = arith.maximumf %96, %97 : vector<1x32xf32>
    %c0_43 = arith.constant 0 : index
    %c0_44 = arith.constant 0 : index
    %99 = vector.load %arg14[%c0_43, %c0_44] : memref<1x32xf32, #tpu.memory_space<vmem>>, vector<1x32xf32>
    %cst_45 = arith.constant 9.99999974E-6 : f32
    %100 = vector.broadcast %cst_45 : f32 to vector<1x32xf32>
    %101 = arith.addf %98, %100 : vector<1x32xf32>
    %102 = math.rsqrt %101 : vector<1x32xf32>
    %103 = arith.mulf %99, %102 : vector<1x32xf32>
    %c0_46 = arith.constant 0 : index
    %c0_47 = arith.constant 0 : index
    %104 = vector.load %arg15[%c0_46, %c0_47] : memref<1x32xf32, #tpu.memory_space<vmem>>, vector<1x32xf32>
    %105 = arith.mulf %93, %103 : vector<1x32xf32>
    %106 = arith.subf %104, %105 : vector<1x32xf32>
    %107 = vector.broadcast %103 : vector<1x32xf32> to vector<8x32xf32>
    %108 = arith.mulf %86, %107 : vector<8x32xf32>
    %109 = vector.broadcast %106 : vector<1x32xf32> to vector<8x32xf32>
    %110 = arith.addf %108, %109 : vector<8x32xf32>
    %111 = math.tanh %110 : vector<8x32xf32>
    %c7_i32 = arith.constant 7 : i32
    %112 = tpu.dynamic_rotate %111 by %c7_i32 dim 0 : vector<8x32xf32>, i32 -> vector<8x32xf32>
    %113 = tpu.concatenate %111, %112 in 1 : vector<8x32xf32>, vector<8x32xf32> -> vector<8x64xf32>
    %c0_48 = arith.constant 0 : index
    %c0_49 = arith.constant 0 : index
    %114 = vector.load %arg17[%c0_48, %c0_49] : memref<64x32xbf16, #tpu.memory_space<vmem>>, vector<64x32xbf16>
    %115 = arith.truncf %113 : vector<8x64xf32> to vector<8x64xbf16>
    %cst_50 = arith.constant dense<0.000000e+00> : vector<8x32xf32>
    %116 = tpu.matmul %115, %114, %cst_50 {dimension_numbers = #tpu.dot_dimension_numbers<[1], [0], [0], [1], [0, 0, 1, 1], [], []>} : vector<8x64xbf16>, vector<64x32xbf16>, vector<8x32xf32> -> vector<8x32xf32>
    %c0_51 = arith.constant 0 : index
    %c0_52 = arith.constant 0 : index
    %117 = vector.load %arg16[%c0_51, %c0_52] : memref<8x8xbf16, #tpu.memory_space<vmem>>, vector<8x8xbf16>
    %118 = arith.truncf %116 : vector<8x32xf32> to vector<8x32xbf16>
    %cst_53 = arith.constant dense<0.000000e+00> : vector<8x32xf32>
    %119 = tpu.matmul %117, %118, %cst_53 {dimension_numbers = #tpu.dot_dimension_numbers<[1], [0], [0], [1], [0, 0, 1, 1], [], []>} : vector<8x8xbf16>, vector<8x32xbf16>, vector<8x32xf32> -> vector<8x32xf32>
    %120 = arith.mulf %119, %119 : vector<8x32xf32>
    %121 = tpu.concatenate %119, %120 in 1 : vector<8x32xf32>, vector<8x32xf32> -> vector<8x64xf32>
    %cst_54 = arith.constant dense<0.000000e+00> : vector<64xf32>
    %122 = vector.multi_reduction <add>, %121, %cst_54 [0] : vector<8x64xf32> to vector<64xf32>
    %123 = vector.shape_cast %122 : vector<64xf32> to vector<1x64xf32>
    %cst_55 = arith.constant 2.500000e-01 : f32
    %124 = vector.broadcast %cst_55 : f32 to vector<1x64xf32>
    %125 = arith.mulf %123, %124 : vector<1x64xf32>
    %126 = vector.extract_strided_slice %125 {offsets = [0, 0], sizes = [1, 32], strides = [1, 1]} : vector<1x64xf32> to vector<1x32xf32>
    %127 = vector.extract_strided_slice %125 {offsets = [0, 32], sizes = [1, 32], strides = [1, 1]} : vector<1x64xf32> to vector<1x32xf32>
    %128 = arith.mulf %126, %126 : vector<1x32xf32>
    %129 = arith.subf %127, %128 : vector<1x32xf32>
    %cst_56 = arith.constant 0.000000e+00 : f32
    %130 = vector.broadcast %cst_56 : f32 to vector<1x32xf32>
    %131 = arith.maximumf %129, %130 : vector<1x32xf32>
    %c0_57 = arith.constant 0 : index
    %c0_58 = arith.constant 0 : index
    %132 = vector.load %arg18[%c0_57, %c0_58] : memref<1x32xf32, #tpu.memory_space<vmem>>, vector<1x32xf32>
    %cst_59 = arith.constant 9.99999974E-6 : f32
    %133 = vector.broadcast %cst_59 : f32 to vector<1x32xf32>
    %134 = arith.addf %131, %133 : vector<1x32xf32>
    %135 = math.rsqrt %134 : vector<1x32xf32>
    %136 = arith.mulf %132, %135 : vector<1x32xf32>
    %c0_60 = arith.constant 0 : index
    %c0_61 = arith.constant 0 : index
    %137 = vector.load %arg19[%c0_60, %c0_61] : memref<1x32xf32, #tpu.memory_space<vmem>>, vector<1x32xf32>
    %138 = arith.mulf %126, %136 : vector<1x32xf32>
    %139 = arith.subf %137, %138 : vector<1x32xf32>
    %140 = vector.broadcast %136 : vector<1x32xf32> to vector<8x32xf32>
    %141 = arith.mulf %119, %140 : vector<8x32xf32>
    %142 = vector.broadcast %139 : vector<1x32xf32> to vector<8x32xf32>
    %143 = arith.addf %141, %142 : vector<8x32xf32>
    %144 = math.tanh %143 : vector<8x32xf32>
    %c7_i32_62 = arith.constant 7 : i32
    %145 = tpu.dynamic_rotate %144 by %c7_i32_62 dim 0 : vector<8x32xf32>, i32 -> vector<8x32xf32>
    %146 = tpu.concatenate %144, %145 in 1 : vector<8x32xf32>, vector<8x32xf32> -> vector<8x64xf32>
    %c0_63 = arith.constant 0 : index
    %c0_64 = arith.constant 0 : index
    %147 = vector.load %arg21[%c0_63, %c0_64] : memref<64x32xbf16, #tpu.memory_space<vmem>>, vector<64x32xbf16>
    %148 = arith.truncf %146 : vector<8x64xf32> to vector<8x64xbf16>
    %cst_65 = arith.constant dense<0.000000e+00> : vector<8x32xf32>
    %149 = tpu.matmul %148, %147, %cst_65 {dimension_numbers = #tpu.dot_dimension_numbers<[1], [0], [0], [1], [0, 0, 1, 1], [], []>} : vector<8x64xbf16>, vector<64x32xbf16>, vector<8x32xf32> -> vector<8x32xf32>
    %c0_66 = arith.constant 0 : index
    %c0_67 = arith.constant 0 : index
    %150 = vector.load %arg20[%c0_66, %c0_67] : memref<8x8xbf16, #tpu.memory_space<vmem>>, vector<8x8xbf16>
    %151 = arith.truncf %149 : vector<8x32xf32> to vector<8x32xbf16>
    %cst_68 = arith.constant dense<0.000000e+00> : vector<8x32xf32>
    %152 = tpu.matmul %150, %151, %cst_68 {dimension_numbers = #tpu.dot_dimension_numbers<[1], [0], [0], [1], [0, 0, 1, 1], [], []>} : vector<8x8xbf16>, vector<8x32xbf16>, vector<8x32xf32> -> vector<8x32xf32>
    %153 = arith.mulf %152, %152 : vector<8x32xf32>
    %154 = tpu.concatenate %152, %153 in 1 : vector<8x32xf32>, vector<8x32xf32> -> vector<8x64xf32>
    %cst_69 = arith.constant dense<0.000000e+00> : vector<64xf32>
    %155 = vector.multi_reduction <add>, %154, %cst_69 [0] : vector<8x64xf32> to vector<64xf32>
    %156 = vector.shape_cast %155 : vector<64xf32> to vector<1x64xf32>
    %cst_70 = arith.constant 5.000000e-01 : f32
    %157 = vector.broadcast %cst_70 : f32 to vector<1x64xf32>
    %158 = arith.mulf %156, %157 : vector<1x64xf32>
    %159 = vector.extract_strided_slice %158 {offsets = [0, 0], sizes = [1, 32], strides = [1, 1]} : vector<1x64xf32> to vector<1x32xf32>
    %160 = vector.extract_strided_slice %158 {offsets = [0, 32], sizes = [1, 32], strides = [1, 1]} : vector<1x64xf32> to vector<1x32xf32>
    %161 = arith.mulf %159, %159 : vector<1x32xf32>
    %162 = arith.subf %160, %161 : vector<1x32xf32>
    %cst_71 = arith.constant 0.000000e+00 : f32
    %163 = vector.broadcast %cst_71 : f32 to vector<1x32xf32>
    %164 = arith.maximumf %162, %163 : vector<1x32xf32>
    %c0_72 = arith.constant 0 : index
    %c0_73 = arith.constant 0 : index
    %165 = vector.load %arg22[%c0_72, %c0_73] : memref<1x32xf32, #tpu.memory_space<vmem>>, vector<1x32xf32>
    %cst_74 = arith.constant 9.99999974E-6 : f32
    %166 = vector.broadcast %cst_74 : f32 to vector<1x32xf32>
    %167 = arith.addf %164, %166 : vector<1x32xf32>
    %168 = math.rsqrt %167 : vector<1x32xf32>
    %169 = arith.mulf %165, %168 : vector<1x32xf32>
    %c0_75 = arith.constant 0 : index
    %c0_76 = arith.constant 0 : index
    %170 = vector.load %arg23[%c0_75, %c0_76] : memref<1x32xf32, #tpu.memory_space<vmem>>, vector<1x32xf32>
    %171 = arith.mulf %159, %169 : vector<1x32xf32>
    %172 = arith.subf %170, %171 : vector<1x32xf32>
    %173 = vector.broadcast %169 : vector<1x32xf32> to vector<8x32xf32>
    %174 = arith.mulf %152, %173 : vector<8x32xf32>
    %175 = vector.broadcast %172 : vector<1x32xf32> to vector<8x32xf32>
    %176 = arith.addf %174, %175 : vector<8x32xf32>
    %177 = math.tanh %176 : vector<8x32xf32>
    %c0_77 = arith.constant 0 : index
    %c0_78 = arith.constant 0 : index
    %178 = vector.load %arg2[%c0_77, %c0_78] : memref<32x128xbf16, #tpu.memory_space<vmem>>, vector<32x128xbf16>
    %179 = arith.truncf %177 : vector<8x32xf32> to vector<8x32xbf16>
    %cst_79 = arith.constant dense<0.000000e+00> : vector<8x128xf32>
    %180 = tpu.matmul %179, %178, %cst_79 {dimension_numbers = #tpu.dot_dimension_numbers<[1], [0], [0], [1], [0, 0, 1, 1], [], []>} : vector<8x32xbf16>, vector<32x128xbf16>, vector<8x128xf32> -> vector<8x128xf32>
    %c0_80 = arith.constant 0 : index
    %c0_81 = arith.constant 0 : index
    %181 = vector.load %arg3[%c0_80, %c0_81] : memref<1x128xf32, #tpu.memory_space<vmem>>, vector<1x128xf32>
    %182 = vector.broadcast %181 : vector<1x128xf32> to vector<8x128xf32>
    %183 = arith.addf %180, %182 : vector<8x128xf32>
    %c0_82 = arith.constant 0 : index
    %c0_83 = arith.constant 0 : index
    %184 = vector.load %arg24[%c0_82, %c0_83] : memref<8x128xf32, #tpu.memory_space<vmem>>, vector<8x128xf32>
    tpu.vector_store %arg24[%c0_82, %c0_83], %183 {strides = array<i32>} : memref<8x128xf32, #tpu.memory_space<vmem>>, vector<8x128xf32>,
    return
  }
}

</mosaic_0001>

<llo_original>
// kernel: tpu_custom_call.1
$region0: #{tpu_custom_call.1}
  #allocation0 [shape = 'u32[]', space=smem, size = 0x4, offset = 0x4, fixed_abs, tag = 'smem constant byte address 0x4 - core index']
  #allocation1 [shape = 'u32[144,128]{1,0:T(1,128)}', space=vmem, size = 0x12000, scoped, tag = 'internal scratch']
  %s0 = inlined_call_operand.vmem [shape: s32[24,1], index: 0, kind: input, shape index: {}]
  %s1 = inlined_call_operand.vmem [shape: s32[24,1], index: 1, kind: input, shape index: {}]
  %s2 = inlined_call_operand.vmem [shape: bf16[32,128], index: 2, kind: input, shape index: {}]
  %s3 = inlined_call_operand.vmem [shape: f32[1,128], index: 3, kind: input, shape index: {}]
  %s4 = inlined_call_operand.vmem [shape: bf16[24,24], index: 4, kind: input, shape index: {}]
  %s5 = inlined_call_operand.vmem [shape: bf16[74,32], index: 5, kind: input, shape index: {}]
  %s6 = inlined_call_operand.vmem [shape: f32[1,32], index: 6, kind: input, shape index: {}]
  %s7 = inlined_call_operand.vmem [shape: f32[1,32], index: 7, kind: input, shape index: {}]
  %s8 = inlined_call_operand.vmem [shape: bf16[16,24], index: 8, kind: input, shape index: {}]
  %s9 = inlined_call_operand.vmem [shape: bf16[64,32], index: 9, kind: input, shape index: {}]
  %s10 = inlined_call_operand.vmem [shape: f32[1,32], index: 10, kind: input, shape index: {}]
  %s11 = inlined_call_operand.vmem [shape: f32[1,32], index: 11, kind: input, shape index: {}]
  %s12 = inlined_call_operand.vmem [shape: bf16[8,16], index: 12, kind: input, shape index: {}]
  %s13 = inlined_call_operand.vmem [shape: bf16[64,32], index: 13, kind: input, shape index: {}]
  %s14 = inlined_call_operand.vmem [shape: f32[1,32], index: 14, kind: input, shape index: {}]
  %s15 = inlined_call_operand.vmem [shape: f32[1,32], index: 15, kind: input, shape index: {}]
  %s16 = inlined_call_operand.vmem [shape: bf16[8,8], index: 16, kind: input, shape index: {}]
  %s17 = inlined_call_operand.vmem [shape: bf16[64,32], index: 17, kind: input, shape index: {}]
  %s18 = inlined_call_operand.vmem [shape: f32[1,32], index: 18, kind: input, shape index: {}]
  %s19 = inlined_call_operand.vmem [shape: f32[1,32], index: 19, kind: input, shape index: {}]
  %s20 = inlined_call_operand.vmem [shape: bf16[8,8], index: 20, kind: input, shape index: {}]
  %s21 = inlined_call_operand.vmem [shape: bf16[64,32], index: 21, kind: input, shape index: {}]
  %s22 = inlined_call_operand.vmem [shape: f32[1,32], index: 22, kind: input, shape index: {}]
  %s23 = inlined_call_operand.vmem [shape: f32[1,32], index: 23, kind: input, shape index: {}]
  %s24 = inlined_call_operand.hbm [shape: f32[8,128], index: 24, kind: output, shape index: {}]
  %s25 = sld [smem:[#allocation0]]
  $region106: #{tpu_custom_call.1} parent=0
    _
  %s27 = ssub.s32 1, %s25
  %s28 = scalar_select 0, %s27, %s25
  $region1: #{tpu_custom_call.1} parent=0
    #allocation2 [shape = 'u8[4096]{0}', space=vmem, size = 0x1000, scoped, tag = 'output window, operand 0, single buffered']
    #allocation3 [shape = 's32[1]{0}', space=sflag, size = 0x4, scoped, tag = 'scoped memory for tpu_custom_call.1']
    %29 = vsyncpa [#allocation3], 0
    // Predicated region
    $region2: #{tpu_custom_call.1} parent=1 // pred_check
      _
    $region3: #{tpu_custom_call.1} parent=1 // pred_check_branch
      %31 = sbr.rel (0) target = $region5
    $region4: #{tpu_custom_call.1} parent=1 // pred_region
      _
    $region5: #{tpu_custom_call.1} parent=1 // pred_fallthru
      _
    // Predicated region
    $region6: #{tpu_custom_call.1} parent=1 // pred_check
      _
    $region7: #{tpu_custom_call.1} parent=1 // pred_check_branch
      %33 = sbr.rel (0) target = $region9
    $region8: #{tpu_custom_call.1} parent=1 // pred_region
      _
    $region9: #{tpu_custom_call.1} parent=1 // pred_fallthru
      _
    // Predicated region
    $region10: #{tpu_custom_call.1} parent=1 // pred_check
      _
    $region11: #{tpu_custom_call.1} parent=1 // pred_check_branch
      %35 = sbr.rel (0) target = $region13
    $region12: #{tpu_custom_call.1} parent=1 // pred_region
      _
    $region13: #{tpu_custom_call.1} parent=1 // pred_fallthru
      _
    // Predicated region
    $region14: #{tpu_custom_call.1} parent=1 // pred_check
      _
    $region15: #{tpu_custom_call.1} parent=1 // pred_check_branch
      %37 = sbr.rel (0) target = $region17
    $region16: #{tpu_custom_call.1} parent=1 // pred_region
      _
    $region17: #{tpu_custom_call.1} parent=1 // pred_fallthru
      _
    // Predicated region
    $region18: #{tpu_custom_call.1} parent=1 // pred_check
      _
    $region19: #{tpu_custom_call.1} parent=1 // pred_check_branch
      %39 = sbr.rel (0) target = $region21
    $region20: #{tpu_custom_call.1} parent=1 // pred_region
      _
    $region21: #{tpu_custom_call.1} parent=1 // pred_fallthru
      _
    // Predicated region
    $region22: #{tpu_custom_call.1} parent=1 // pred_check
      _
    $region23: #{tpu_custom_call.1} parent=1 // pred_check_branch
      %41 = sbr.rel (0) target = $region25
    $region24: #{tpu_custom_call.1} parent=1 // pred_region
      _
    $region25: #{tpu_custom_call.1} parent=1 // pred_fallthru
      _
    // Predicated region
    $region26: #{tpu_custom_call.1} parent=1 // pred_check
      _
    $region27: #{tpu_custom_call.1} parent=1 // pred_check_branch
      %43 = sbr.rel (0) target = $region29
    $region28: #{tpu_custom_call.1} parent=1 // pred_region
      _
    $region29: #{tpu_custom_call.1} parent=1 // pred_fallthru
      _
    // Predicated region
    $region30: #{tpu_custom_call.1} parent=1 // pred_check
      _
    $region31: #{tpu_custom_call.1} parent=1 // pred_check_branch
      %45 = sbr.rel (0) target = $region33
    $region32: #{tpu_custom_call.1} parent=1 // pred_region
      _
    $region33: #{tpu_custom_call.1} parent=1 // pred_fallthru
      _
    // Predicated region
    $region34: #{tpu_custom_call.1} parent=1 // pred_check
      _
    $region35: #{tpu_custom_call.1} parent=1 // pred_check_branch
      %47 = sbr.rel (0) target = $region37
    $region36: #{tpu_custom_call.1} parent=1 // pred_region
      _
    $region37: #{tpu_custom_call.1} parent=1 // pred_fallthru
      _
    // Predicated region
    $region38: #{tpu_custom_call.1} parent=1 // pred_check
      _
    $region39: #{tpu_custom_call.1} parent=1 // pred_check_branch
      %49 = sbr.rel (0) target = $region41
    $region40: #{tpu_custom_call.1} parent=1 // pred_region
      _
    $region41: #{tpu_custom_call.1} parent=1 // pred_fallthru
      _
    // Predicated region
    $region42: #{tpu_custom_call.1} parent=1 // pred_check
      _
    $region43: #{tpu_custom_call.1} parent=1 // pred_check_branch
      %51 = sbr.rel (0) target = $region45
    $region44: #{tpu_custom_call.1} parent=1 // pred_region
      _
    $region45: #{tpu_custom_call.1} parent=1 // pred_fallthru
      _
    // Predicated region
    $region46: #{tpu_custom_call.1} parent=1 // pred_check
      _
    $region47: #{tpu_custom_call.1} parent=1 // pred_check_branch
      %53 = sbr.rel (0) target = $region49
    $region48: #{tpu_custom_call.1} parent=1 // pred_region
      _
    $region49: #{tpu_custom_call.1} parent=1 // pred_fallthru
      _
    // Predicated region
    $region50: #{tpu_custom_call.1} parent=1 // pred_check
      _
    $region51: #{tpu_custom_call.1} parent=1 // pred_check_branch
      %55 = sbr.rel (0) target = $region53
    $region52: #{tpu_custom_call.1} parent=1 // pred_region
      _
    $region53: #{tpu_custom_call.1} parent=1 // pred_fallthru
      _
    // Predicated region
    $region54: #{tpu_custom_call.1} parent=1 // pred_check
      _
    $region55: #{tpu_custom_call.1} parent=1 // pred_check_branch
      %57 = sbr.rel (0) target = $region57
    $region56: #{tpu_custom_call.1} parent=1 // pred_region
      _
    $region57: #{tpu_custom_call.1} parent=1 // pred_fallthru
      _
    // Predicated region
    $region58: #{tpu_custom_call.1} parent=1 // pred_check
      _
    $region59: #{tpu_custom_call.1} parent=1 // pred_check_branch
      %59 = sbr.rel (0) target = $region61
    $region60: #{tpu_custom_call.1} parent=1 // pred_region
      _
    $region61: #{tpu_custom_call.1} parent=1 // pred_fallthru
      _
    // Predicated region
    $region62: #{tpu_custom_call.1} parent=1 // pred_check
      _
    $region63: #{tpu_custom_call.1} parent=1 // pred_check_branch
      %61 = sbr.rel (0) target = $region65
    $region64: #{tpu_custom_call.1} parent=1 // pred_region
      _
    $region65: #{tpu_custom_call.1} parent=1 // pred_fallthru
      _
    // Predicated region
    $region66: #{tpu_custom_call.1} parent=1 // pred_check
      _
    $region67: #{tpu_custom_call.1} parent=1 // pred_check_branch
      %63 = sbr.rel (0) target = $region69
    $region68: #{tpu_custom_call.1} parent=1 // pred_region
      _
    $region69: #{tpu_custom_call.1} parent=1 // pred_fallthru
      _
    // Predicated region
    $region70: #{tpu_custom_call.1} parent=1 // pred_check
      _
    $region71: #{tpu_custom_call.1} parent=1 // pred_check_branch
      %65 = sbr.rel (0) target = $region73
    $region72: #{tpu_custom_call.1} parent=1 // pred_region
      _
    $region73: #{tpu_custom_call.1} parent=1 // pred_fallthru
      _
    // Predicated region
    $region74: #{tpu_custom_call.1} parent=1 // pred_check
      _
    $region75: #{tpu_custom_call.1} parent=1 // pred_check_branch
      %67 = sbr.rel (0) target = $region77
    $region76: #{tpu_custom_call.1} parent=1 // pred_region
      _
    $region77: #{tpu_custom_call.1} parent=1 // pred_fallthru
      _
    // Predicated region
    $region78: #{tpu_custom_call.1} parent=1 // pred_check
      _
    $region79: #{tpu_custom_call.1} parent=1 // pred_check_branch
      %69 = sbr.rel (0) target = $region81
    $region80: #{tpu_custom_call.1} parent=1 // pred_region
      _
    $region81: #{tpu_custom_call.1} parent=1 // pred_fallthru
      _
    // Predicated region
    $region82: #{tpu_custom_call.1} parent=1 // pred_check
      _
    $region83: #{tpu_custom_call.1} parent=1 // pred_check_branch
      %71 = sbr.rel (0) target = $region85
    $region84: #{tpu_custom_call.1} parent=1 // pred_region
      _
    $region85: #{tpu_custom_call.1} parent=1 // pred_fallthru
      _
    // Predicated region
    $region86: #{tpu_custom_call.1} parent=1 // pred_check
      _
    $region87: #{tpu_custom_call.1} parent=1 // pred_check_branch
      %73 = sbr.rel (0) target = $region89
    $region88: #{tpu_custom_call.1} parent=1 // pred_region
      _
    $region89: #{tpu_custom_call.1} parent=1 // pred_fallthru
      _
    // Predicated region
    $region90: #{tpu_custom_call.1} parent=1 // pred_check
      _
    $region91: #{tpu_custom_call.1} parent=1 // pred_check_branch
      %75 = sbr.rel (0) target = $region93
    $region92: #{tpu_custom_call.1} parent=1 // pred_region
      _
    $region93: #{tpu_custom_call.1} parent=1 // pred_fallthru
      _
    // Predicated region
    $region94: #{tpu_custom_call.1} parent=1 // pred_check
      _
    $region95: #{tpu_custom_call.1} parent=1 // pred_check_branch
      %77 = sbr.rel (0) target = $region97
    $region96: #{tpu_custom_call.1} parent=1 // pred_region
      _
    $region97: #{tpu_custom_call.1} parent=1 // pred_fallthru
      _
    %v79 = vlaneseq
    %v80 = vand.u32 %v79, 127
    %v81 = vld [vmem:[%s0] sm:$0xff]
    %v82 = vld [vmem:[%s0 + $0x8] sm:$0xff]
    %v83 = vld [vmem:[%s0 + $0x10] sm:$0xff]
    %84 = vset.pattern.permute.xlu0 0
    %85 = vperm.xlu0 %84, %v81
    %v86 = vpop.permute.xlu0 %85
    %87 = vset.pattern.permute.xlu0 0
    %88 = vperm.xlu0 %87, %v82
    %v89 = vpop.permute.xlu0 %88
    %90 = vset.pattern.permute.xlu0 0
    %91 = vperm.xlu0 %90, %v83
    %v92 = vpop.permute.xlu0 %91
    %vm93 = vcmp.eq.s32.totalorder %v80, %v86
    %vm94 = vcmp.eq.s32.totalorder %v80, %v89
    %vm95 = vcmp.eq.s32.totalorder %v80, %v92
    %v96 = vld [vmem:[%s1] sm:$0xff]
    %v97 = vld [vmem:[%s1 + $0x8] sm:$0xff]
    %v98 = vld [vmem:[%s1 + $0x10] sm:$0xff]
    %99 = vset.pattern.permute.xlu0 0
    %100 = vperm.xlu0 %99, %v96
    %v101 = vpop.permute.xlu0 %100
    %102 = vset.pattern.permute.xlu0 0
    %103 = vperm.xlu0 %102, %v97
    %v104 = vpop.permute.xlu0 %103
    %105 = vset.pattern.permute.xlu0 0
    %106 = vperm.xlu0 %105, %v98
    %v107 = vpop.permute.xlu0 %106
    %vm108 = vcmp.eq.s32.totalorder %v80, %v101
    %vm109 = vcmp.eq.s32.totalorder %v80, %v104
    %vm110 = vcmp.eq.s32.totalorder %v80, %v107
    %vm111 = vmor %vm93, %vm108
    %vm112 = vmor %vm94, %vm109
    %vm113 = vmor %vm95, %vm110
    %v114 = vsel %vm111, 1.0, 0.0
    %v115 = vsel %vm112, 1.0, 0.0
    %v116 = vsel %vm113, 1.0, 0.0
    %v117 = vpack.c.bf16 %v115, %v114
    %v118 = vpack.c.bf16 %v116, %v116
    %v119 = vld [vmem:[%s5] sm:$0xf]
    %v120 = vld [vmem:[%s5 + $0x4] sm:$0xf]
    %v121 = vld [vmem:[%s5 + $0x8] sm:$0xf]
    %v122 = vld [vmem:[%s5 + $0xc] sm:$0xf]
    %v123 = vld [vmem:[%s5 + $0x10] sm:$0xf]
    %v124 = vld [vmem:[%s5 + $0x14] sm:$0xf]
    %v125 = vld [vmem:[%s5 + $0x18] sm:$0xf]
    %v126 = vld [vmem:[%s5 + $0x1c] sm:$0xf]
    %v127 = vld [vmem:[%s5 + $0x20] sm:$0xf]
    %v128 = vld [vmem:[%s5 + $0x24] sm:$0x1]
    %v139 = vunpack.c.l.b16 %v119
    %v140 = vunpack.c.l.b16 %v120
    %v141 = vunpack.c.l.b16 %v121
    %v142 = vunpack.c.l.b16 %v122
    %v143 = vunpack.c.l.b16 %v123
    %v144 = vunpack.c.l.b16 %v124
    %v145 = vunpack.c.l.b16 %v125
    %v146 = vunpack.c.l.b16 %v126
    %v147 = vunpack.c.l.b16 %v127
    %v148 = vunpack.c.l.b16 %v128
    %v149 = vpack.c.b16 %v140, %v139
    %v150 = vpack.c.b16 %v142, %v141
    %v151 = vpack.c.b16 %v144, %v143
    %v152 = vpack.c.b16 %v146, %v145
    %v153 = vpack.c.b16 %v148, %v147
    %vm158 = vcmask 605184
    %v160 = vsel %vm158, %v117, 0
    %v163 = vsel %vm158, %v118, 0
    %vm165 = vcmask 1044480
    %v167 = vsel %vm165, %v153, 0
    %169 = vmatprep.subr.bf16.mxu0 0
    %170 = vmatpush1.bf16.msra.mxu0 0
    %171 = vmatprep.subr.bf16.mxu0 0
    %172 = vmatpush1.bf16.msra.mxu0 0
    %173 = vmatprep.subr.bf16.mxu0 0
    %174 = vmatpush1.bf16.msra.mxu0 0
    %175 = vmatprep.subr.bf16.mxu0 0
    %176 = vmatpush1.bf16.msra.mxu0 %v167
    %177 = vmatprep.subr.bf16.mxu0 0
    %178 = vmatpush1.bf16.msra.mxu0 %v152
    %179 = vmatprep.subr.bf16.mxu0 0
    %180 = vmatpush1.bf16.msra.mxu0 %v151
    %181 = vmatprep.subr.bf16.mxu0 0
    %182 = vmatpush1.bf16.msra.mxu0 %v150
    %183 = vmatprep.subr.bf16.mxu0 0
    %184 = vmatpush1.bf16.msra.mxu0 %v149
    %185 = vmatprep.subr.bf16.mxu0 0
    %186 = vmatpush2.bf16.msra.mxu0 0
    %187 = vmatprep.subr.bf16.mxu0 0
    %188 = vmatpush2.bf16.msra.mxu0 0
    %189 = vmatprep.subr.bf16.mxu0 0
    %190 = vmatpush2.bf16.msra.mxu0 0
    %191 = vmatprep.subr.bf16.mxu0 0
    %192 = vmatpush2.bf16.msra.mxu0 0
    %193 = vmatprep.subr.bf16.mxu0 0
    %194 = vmatpush2.bf16.msra.mxu0 0
    %195 = vmatprep.subr.bf16.mxu0 0
    %196 = vmatpush2.bf16.msra.mxu0 0
    %197 = vmatprep.subr.bf16.mxu0 0
    %198 = vmatpush2.bf16.msra.mxu0 0
    %199 = vmatprep.subr.bf16.mxu0 0
    %200 = vmatpush2.bf16.msra.mxu0 0
    %201 = vmatprep.mubr.bf16.mxu0 0
    %202 = vmatmul.mubr.bf16.gmra.mxu0 %v160
    %v203 = vpop.f32.mrf.mxu0
    %v204 = vadd.f32 0.0, %v203
    %v205 = vpop.f32.mrf.mxu0
    %v206 = vpop.f32.mrf.mxu0
    %v207 = vadd.f32 0.0, %v206
    %v208 = vpop.f32.mrf.mxu0
    %209 = vmatprep.mubr.bf16.mxu0 0
    %210 = vmatmul.mubr.bf16.gmra.mxu0 %v163
    %v211 = vpop.f32.mrf.mxu0
    %v212 = vadd.f32 0.0, %v211
    %v213 = vpop.f32.mrf.mxu0
    %v214 = vpop.f32.mrf.mxu0
    %v215 = vpop.f32.mrf.mxu0
    %216 = vdwg.mxu0
    %v217 = vld [vmem:[%s4] sm:$0xf]
    %v218 = vld [vmem:[%s4 + $0x4] sm:$0xf]
    %v219 = vld [vmem:[%s4 + $0x8] sm:$0xf]
    %v220 = vpack.c.bf16 %v207, %v204
    %v221 = vpack.c.bf16 %v212, %v212
    %v225 = vunpack.c.l.b16 %v217
    %v226 = vunpack.c.l.b16 %v218
    %v227 = vunpack.c.l.b16 %v219
    %v228 = vpack.c.b16 %v226, %v225
    %v229 = vpack.c.b16 %v227, %v227
    %vm230 = vcmask 195584
    %v232 = vsel %vm230, %v228, 0
    %v235 = vsel %vm230, %v229, 0
    %vm237 = vcmask 1043456
    %v239 = vsel %vm237, %v221, 0
    %241 = vmatprep.subr.bf16.mxu0 0
    %242 = vmatpush1.bf16.msra.mxu0 0
    %243 = vmatprep.subr.bf16.mxu0 0
    %244 = vmatpush1.bf16.msra.mxu0 0
    %245 = vmatprep.subr.bf16.mxu0 0
    %246 = vmatpush1.bf16.msra.mxu0 0
    %247 = vmatprep.subr.bf16.mxu0 0
    %248 = vmatpush1.bf16.msra.mxu0 0
    %249 = vmatprep.subr.bf16.mxu0 0
    %250 = vmatpush1.bf16.msra.mxu0 0
    %251 = vmatprep.subr.bf16.mxu0 0
    %252 = vmatpush1.bf16.msra.mxu0 0
    %253 = vmatprep.subr.bf16.mxu0 0
    %254 = vmatpush1.bf16.msra.mxu0 %v239
    %255 = vmatprep.subr.bf16.mxu0 0
    %256 = vmatpush1.bf16.msra.mxu0 %v220
    %257 = vmatprep.subr.bf16.mxu0 0
    %258 = vmatpush2.bf16.msra.mxu0 0
    %259 = vmatprep.subr.bf16.mxu0 0
    %260 = vmatpush2.bf16.msra.mxu0 0
    %261 = vmatprep.subr.bf16.mxu0 0
    %262 = vmatpush2.bf16.msra.mxu0 0
    %263 = vmatprep.subr.bf16.mxu0 0
    %264 = vmatpush2.bf16.msra.mxu0 0
    %265 = vmatprep.subr.bf16.mxu0 0
    %266 = vmatpush2.bf16.msra.mxu0 0
    %267 = vmatprep.subr.bf16.mxu0 0
    %268 = vmatpush2.bf16.msra.mxu0 0
    %269 = vmatprep.subr.bf16.mxu0 0
    %270 = vmatpush2.bf16.msra.mxu0 0
    %271 = vmatprep.subr.bf16.mxu0 0
    %272 = vmatpush2.bf16.msra.mxu0 0
    %273 = vmatprep.mubr.bf16.mxu0 0
    %274 = vmatmul.mubr.bf16.gmra.mxu0 %v232
    %v275 = vpop.f32.mrf.mxu0
    %v276 = vadd.f32 0.0, %v275
    %v277 = vpop.f32.mrf.mxu0
    %v278 = vpop.f32.mrf.mxu0
    %v279 = vadd.f32 0.0, %v278
    %v280 = vpop.f32.mrf.mxu0
    %281 = vmatprep.mubr.bf16.mxu0 0
    %282 = vmatmul.mubr.bf16.gmra.mxu0 %v235
    %v283 = vpop.f32.mrf.mxu0
    %v284 = vadd.f32 0.0, %v283
    %v285 = vpop.f32.mrf.mxu0
    %v286 = vpop.f32.mrf.mxu0
    %v287 = vpop.f32.mrf.mxu0
    %288 = vdwg.mxu0
    %v289 = vmul.f32 %v276, %v276
    %v290 = vmul.f32 %v279, %v279
    %v291 = vmul.f32 %v284, %v284
    %295 = vrot.lane.b32.xlu0 %v289, 32
    %v296 = vpop.permute.xlu0 %295
    %297 = vrot.lane.b32.xlu0 %v290, 32
    %v298 = vpop.permute.xlu0 %297
    %299 = vrot.lane.b32.xlu0 %v291, 32
    %v300 = vpop.permute.xlu0 %299
    %vm304 = vcmask 261120
    %v305 = vsel %vm304, %v276, %v296
    %v306 = vsel %vm304, %v279, %v298
    %v307 = vsel %vm304, %v284, %v300
    %vm308 = vcmask 523264
    %v309 = vsel %vm308, %v305, 0.0
    %v310 = vsel %vm308, %v306, 0.0
    %v311 = vadd.f32 %v309, %v310
    %v312 = vsel %vm308, %v307, 0.0
    %v313 = vadd.f32 %v311, %v312
    %v314 = vrot.slane %v313, 4
    %v315 = vadd.f32 %v313, %v314
    %v316 = vrot.slane %v315, 2
    %v317 = vadd.f32 %v315, %v316
    %v318 = vrot.slane %v317, 1
    %v319 = vadd.f32 %v317, %v318
    %v320 = vmul.f32 %v319, 0.045454547
    %v321 = vmul.f32 %v320, %v320
    %323 = vrot.lane.b32.xlu0 %v321, 32
    %v324 = vpop.permute.xlu0 %323
    %v326 = vsub.f32 %v320, %v324
    %v327 = vmax.f32 %v326, 0.0
    %v328 = vld [vmem:[%s6] sm:$0x1]
    %v329 = vadd.f32 %v327, 1e-05
    %v330 = vrsqrt.pop %v329
    %v333 = vunpack.c.l.s4 1966171168
    %v334 = vunpack.c.0.s8 %v333
    %v335 = vlaneseq
    %v336 = vshrl.u32 %v335, 7
    %v337 = vsub.s32 %v334, %v336
    %v338 = vrot.slane %v330, %v337
    %v340 = vunpack.c.l.s4 1966171168
    %v341 = vunpack.c.0.s8 %v340
    %v342 = vlaneseq
    %v343 = vshrl.u32 %v342, 7
    %v344 = vsub.s32 %v341, %v343
    %v345 = vrot.slane %v338, %v344
    %346 = vrot.lane.b32.xlu0 %v345, 96
    %v347 = vpop.permute.xlu0 %346
    %v349 = vmul.f32 %v328, %v347
    %v350 = vld [vmem:[%s7] sm:$0x1]
    %v351 = vmul.f32 %v320, %v349
    %v352 = vsub.f32 %v350, %v351
    %v354 = vlaneseq
    %v355 = vshrl.u32 %v354, 7
    %v356 = vsub.s32 0, %v355
    %v357 = vrot.slane %v349, %v356
    %v359 = vmul.f32 %v276, %v357
    %v360 = vmul.f32 %v279, %v357
    %v361 = vmul.f32 %v284, %v357
    %v363 = vlaneseq
    %v364 = vshrl.u32 %v363, 7
    %v365 = vsub.s32 0, %v364
    %v366 = vrot.slane %v352, %v365
    %v368 = vadd.f32 %v359, %v366
    %v369 = vadd.f32 %v360, %v366
    %v370 = vadd.f32 %v361, %v366
    %vm371 = vcmp.gt.f32.partialorder %v368, 0.0
    %vm372 = vcmp.gt.f32.partialorder %v369, 0.0
    %vm373 = vcmp.gt.f32.partialorder %v370, 0.0
    %v374 = vmul.f32 %v368, 0.1
    %v375 = vmul.f32 %v369, 0.1
    %v376 = vmul.f32 %v370, 0.1
    %v377 = vsel %vm371, %v368, %v374
    %v378 = vsel %vm372, %v369, %v375
    %v379 = vsel %vm373, %v370, %v376
    %v380 = vrot.slane %v377, 1
    %v381 = vrot.slane %v378, 1
    %v382 = vrot.slane %v379, 1
    %v383 = vlaneseq
    %v384 = vshrl.u32 %v383, 7
    %vm385 = vcmp.lt.s32.totalorder %v384, 7
    %v386 = vsel %vm385, %v381, %v382
    %v387 = vsel %vm385, %v380, %v381
    %v388 = vsel %vm385, %v382, %v380
    %392 = vrot.lane.b32.xlu0 %v387, 32
    %v393 = vpop.permute.xlu0 %392
    %394 = vrot.lane.b32.xlu0 %v386, 32
    %v395 = vpop.permute.xlu0 %394
    %396 = vrot.lane.b32.xlu0 %v388, 32
    %v397 = vpop.permute.xlu0 %396
    %v401 = vsel %vm304, %v377, %v393
    %v402 = vsel %vm304, %v378, %v395
    %v403 = vsel %vm304, %v379, %v397
    %v404 = vld [vmem:[%s9] sm:$0xf]
    %v405 = vld [vmem:[%s9 + $0x4] sm:$0xf]
    %v406 = vld [vmem:[%s9 + $0x8] sm:$0xf]
    %v407 = vld [vmem:[%s9 + $0xc] sm:$0xf]
    %v408 = vld [vmem:[%s9 + $0x10] sm:$0xf]
    %v409 = vld [vmem:[%s9 + $0x14] sm:$0xf]
    %v410 = vld [vmem:[%s9 + $0x18] sm:$0xf]
    %v411 = vld [vmem:[%s9 + $0x1c] sm:$0xf]
    %v412 = vpack.c.bf16 %v402, %v401
    %v413 = vpack.c.bf16 %v403, %v403
    %v422 = vunpack.c.l.b16 %v404
    %v423 = vunpack.c.l.b16 %v405
    %v424 = vunpack.c.l.b16 %v406
    %v425 = vunpack.c.l.b16 %v407
    %v426 = vunpack.c.l.b16 %v408
    %v427 = vunpack.c.l.b16 %v409
    %v428 = vunpack.c.l.b16 %v410
    %v429 = vunpack.c.l.b16 %v411
    %v430 = vpack.c.b16 %v423, %v422
    %v431 = vpack.c.b16 %v425, %v424
    %v432 = vpack.c.b16 %v427, %v426
    %v433 = vpack.c.b16 %v429, %v428
    %v439 = vsel %vm308, %v412, 0
    %v442 = vsel %vm308, %v413, 0
    %444 = vmatprep.subr.bf16.mxu0 0
    %445 = vmatpush1.bf16.msra.mxu0 0
    %446 = vmatprep.subr.bf16.mxu0 0
    %447 = vmatpush1.bf16.msra.mxu0 0
    %448 = vmatprep.subr.bf16.mxu0 0
    %449 = vmatpush1.bf16.msra.mxu0 0
    %450 = vmatprep.subr.bf16.mxu0 0
    %451 = vmatpush1.bf16.msra.mxu0 0
    %452 = vmatprep.subr.bf16.mxu0 0
    %453 = vmatpush1.bf16.msra.mxu0 %v433
    %454 = vmatprep.subr.bf16.mxu0 0
    %455 = vmatpush1.bf16.msra.mxu0 %v432
    %456 = vmatprep.subr.bf16.mxu0 0
    %457 = vmatpush1.bf16.msra.mxu0 %v431
    %458 = vmatprep.subr.bf16.mxu0 0
    %459 = vmatpush1.bf16.msra.mxu0 %v430
    %460 = vmatprep.subr.bf16.mxu0 0
    %461 = vmatpush2.bf16.msra.mxu0 0
    %462 = vmatprep.subr.bf16.mxu0 0
    %463 = vmatpush2.bf16.msra.mxu0 0
    %464 = vmatprep.subr.bf16.mxu0 0
    %465 = vmatpush2.bf16.msra.mxu0 0
    %466 = vmatprep.subr.bf16.mxu0 0
    %467 = vmatpush2.bf16.msra.mxu0 0
    %468 = vmatprep.subr.bf16.mxu0 0
    %469 = vmatpush2.bf16.msra.mxu0 0
    %470 = vmatprep.subr.bf16.mxu0 0
    %471 = vmatpush2.bf16.msra.mxu0 0
    %472 = vmatprep.subr.bf16.mxu0 0
    %473 = vmatpush2.bf16.msra.mxu0 0
    %474 = vmatprep.subr.bf16.mxu0 0
    %475 = vmatpush2.bf16.msra.mxu0 0
    %476 = vmatprep.mubr.bf16.mxu0 0
    %477 = vmatmul.mubr.bf16.gmra.mxu0 %v439
    %v478 = vpop.f32.mrf.mxu0
    %v479 = vadd.f32 0.0, %v478
    %v480 = vpop.f32.mrf.mxu0
    %v481 = vpop.f32.mrf.mxu0
    %v482 = vadd.f32 0.0, %v481
    %v483 = vpop.f32.mrf.mxu0
    %484 = vmatprep.mubr.bf16.mxu0 0
    %485 = vmatmul.mubr.bf16.gmra.mxu0 %v442
    %v486 = vpop.f32.mrf.mxu0
    %v487 = vadd.f32 0.0, %v486
    %v488 = vpop.f32.mrf.mxu0
    %v489 = vpop.f32.mrf.mxu0
    %v490 = vpop.f32.mrf.mxu0
    %491 = vdwg.mxu0
    %v492 = vld [vmem:[%s8] sm:$0xf]
    %v493 = vld [vmem:[%s8 + $0x4] sm:$0xf]
    %v494 = vpack.c.bf16 %v482, %v479
    %v495 = vpack.c.bf16 %v487, %v487
    %v498 = vunpack.c.l.b16 %v492
    %v499 = vunpack.c.l.b16 %v493
    %v500 = vpack.c.b16 %v499, %v498
    %v502 = vsel %vm230, %v500, 0
    %v505 = vsel %vm237, %v495, 0
    %507 = vmatprep.subr.bf16.mxu0 0
    %508 = vmatpush1.bf16.msra.mxu0 0
    %509 = vmatprep.subr.bf16.mxu0 0
    %510 = vmatpush1.bf16.msra.mxu0 0
    %511 = vmatprep.subr.bf16.mxu0 0
    %512 = vmatpush1.bf16.msra.mxu0 0
    %513 = vmatprep.subr.bf16.mxu0 0
    %514 = vmatpush1.bf16.msra.mxu0 0
    %515 = vmatprep.subr.bf16.mxu0 0
    %516 = vmatpush1.bf16.msra.mxu0 0
    %517 = vmatprep.subr.bf16.mxu0 0
    %518 = vmatpush1.bf16.msra.mxu0 0
    %519 = vmatprep.subr.bf16.mxu0 0
    %520 = vmatpush1.bf16.msra.mxu0 %v505
    %521 = vmatprep.subr.bf16.mxu0 0
    %522 = vmatpush1.bf16.msra.mxu0 %v494
    %523 = vmatprep.subr.bf16.mxu0 0
    %524 = vmatpush2.bf16.msra.mxu0 0
    %525 = vmatprep.subr.bf16.mxu0 0
    %526 = vmatpush2.bf16.msra.mxu0 0
    %527 = vmatprep.subr.bf16.mxu0 0
    %528 = vmatpush2.bf16.msra.mxu0 0
    %529 = vmatprep.subr.bf16.mxu0 0
    %530 = vmatpush2.bf16.msra.mxu0 0
    %531 = vmatprep.subr.bf16.mxu0 0
    %532 = vmatpush2.bf16.msra.mxu0 0
    %533 = vmatprep.subr.bf16.mxu0 0
    %534 = vmatpush2.bf16.msra.mxu0 0
    %535 = vmatprep.subr.bf16.mxu0 0
    %536 = vmatpush2.bf16.msra.mxu0 0
    %537 = vmatprep.subr.bf16.mxu0 0
    %538 = vmatpush2.bf16.msra.mxu0 0
    %539 = vmatprep.mubr.bf16.mxu0 0
    %540 = vmatmul.mubr.bf16.gmra.mxu0 %v502
    %v541 = vpop.f32.mrf.mxu0
    %v542 = vadd.f32 0.0, %v541
    %v543 = vpop.f32.mrf.mxu0
    %v544 = vpop.f32.mrf.mxu0
    %v545 = vadd.f32 0.0, %v544
    %v546 = vpop.f32.mrf.mxu0
    %547 = vdwg.mxu0
    %v548 = vmul.f32 %v542, %v542
    %v549 = vmul.f32 %v545, %v545
    %552 = vrot.lane.b32.xlu0 %v548, 32
    %v553 = vpop.permute.xlu0 %552
    %554 = vrot.lane.b32.xlu0 %v549, 32
    %v555 = vpop.permute.xlu0 %554
    %v558 = vsel %vm304, %v542, %v553
    %v559 = vsel %vm304, %v545, %v555
    %v560 = vsel %vm308, %v558, 0.0
    %v561 = vsel %vm308, %v559, 0.0
    %v562 = vadd.f32 %v560, %v561
    %v563 = vrot.slane %v562, 4
    %v564 = vadd.f32 %v562, %v563
    %v565 = vrot.slane %v564, 2
    %v566 = vadd.f32 %v564, %v565
    %v567 = vrot.slane %v566, 1
    %v568 = vadd.f32 %v566, %v567
    %v569 = vmul.f32 %v568, 0.1
    %v570 = vmul.f32 %v569, %v569
    %572 = vrot.lane.b32.xlu0 %v570, 32
    %v573 = vpop.permute.xlu0 %572
    %v575 = vsub.f32 %v569, %v573
    %v576 = vmax.f32 %v575, 0.0
    %v577 = vld [vmem:[%s10] sm:$0x1]
    %v578 = vadd.f32 %v576, 1e-05
    %v579 = vrsqrt.pop %v578
    %v582 = vunpack.c.l.s4 1966171168
    %v583 = vunpack.c.0.s8 %v582
    %v584 = vlaneseq
    %v585 = vshrl.u32 %v584, 7
    %v586 = vsub.s32 %v583, %v585
    %v587 = vrot.slane %v579, %v586
    %v589 = vunpack.c.l.s4 1966171168
    %v590 = vunpack.c.0.s8 %v589
    %v591 = vlaneseq
    %v592 = vshrl.u32 %v591, 7
    %v593 = vsub.s32 %v590, %v592
    %v594 = vrot.slane %v587, %v593
    %595 = vrot.lane.b32.xlu0 %v594, 96
    %v596 = vpop.permute.xlu0 %595
    %v598 = vmul.f32 %v577, %v596
    %v599 = vld [vmem:[%s11] sm:$0x1]
    %v600 = vmul.f32 %v569, %v598
    %v601 = vsub.f32 %v599, %v600
    %v603 = vlaneseq
    %v604 = vshrl.u32 %v603, 7
    %v605 = vsub.s32 0, %v604
    %v606 = vrot.slane %v598, %v605
    %v608 = vmul.f32 %v542, %v606
    %v609 = vmul.f32 %v545, %v606
    %v611 = vlaneseq
    %v612 = vshrl.u32 %v611, 7
    %v613 = vsub.s32 0, %v612
    %v614 = vrot.slane %v601, %v613
    %v616 = vadd.f32 %v608, %v614
    %v617 = vadd.f32 %v609, %v614
    %v618 = vtanh.pop %v616
    %v619 = vtanh.pop %v617
    %v620 = vrot.slane %v618, 1
    %v621 = vrot.slane %v619, 1
    %v622 = vsel %vm385, %v620, %v621
    %v623 = vsel %vm385, %v621, %v620
    %626 = vrot.lane.b32.xlu0 %v622, 32
    %v627 = vpop.permute.xlu0 %626
    %628 = vrot.lane.b32.xlu0 %v623, 32
    %v629 = vpop.permute.xlu0 %628
    %v632 = vsel %vm304, %v618, %v627
    %v633 = vsel %vm304, %v619, %v629
    %v634 = vld [vmem:[%s13] sm:$0xf]
    %v635 = vld [vmem:[%s13 + $0x4] sm:$0xf]
    %v636 = vld [vmem:[%s13 + $0x8] sm:$0xf]
    %v637 = vld [vmem:[%s13 + $0xc] sm:$0xf]
    %v638 = vld [vmem:[%s13 + $0x10] sm:$0xf]
    %v639 = vld [vmem:[%s13 + $0x14] sm:$0xf]
    %v640 = vld [vmem:[%s13 + $0x18] sm:$0xf]
    %v641 = vld [vmem:[%s13 + $0x1c] sm:$0xf]
    %v642 = vpack.c.bf16 %v633, %v632
    %v651 = vunpack.c.l.b16 %v634
    %v652 = vunpack.c.l.b16 %v635
    %v653 = vunpack.c.l.b16 %v636
    %v654 = vunpack.c.l.b16 %v637
    %v655 = vunpack.c.l.b16 %v638
    %v656 = vunpack.c.l.b16 %v639
    %v657 = vunpack.c.l.b16 %v640
    %v658 = vunpack.c.l.b16 %v641
    %v659 = vpack.c.b16 %v652, %v651
    %v660 = vpack.c.b16 %v654, %v653
    %v661 = vpack.c.b16 %v656, %v655
    %v662 = vpack.c.b16 %v658, %v657
    %v668 = vsel %vm308, %v642, 0
    %670 = vmatprep.subr.bf16.mxu0 0
    %671 = vmatpush1.bf16.msra.mxu0 0
    %672 = vmatprep.subr.bf16.mxu0 0
    %673 = vmatpush1.bf16.msra.mxu0 0
    %674 = vmatprep.subr.bf16.mxu0 0
    %675 = vmatpush1.bf16.msra.mxu0 0
    %676 = vmatprep.subr.bf16.mxu0 0
    %677 = vmatpush1.bf16.msra.mxu0 0
    %678 = vmatprep.subr.bf16.mxu0 0
    %679 = vmatpush1.bf16.msra.mxu0 %v662
    %680 = vmatprep.subr.bf16.mxu0 0
    %681 = vmatpush1.bf16.msra.mxu0 %v661
    %682 = vmatprep.subr.bf16.mxu0 0
    %683 = vmatpush1.bf16.msra.mxu0 %v660
    %684 = vmatprep.subr.bf16.mxu0 0
    %685 = vmatpush1.bf16.msra.mxu0 %v659
    %686 = vmatprep.subr.bf16.mxu0 0
    %687 = vmatpush2.bf16.msra.mxu0 0
    %688 = vmatprep.subr.bf16.mxu0 0
    %689 = vmatpush2.bf16.msra.mxu0 0
    %690 = vmatprep.subr.bf16.mxu0 0
    %691 = vmatpush2.bf16.msra.mxu0 0
    %692 = vmatprep.subr.bf16.mxu0 0
    %693 = vmatpush2.bf16.msra.mxu0 0
    %694 = vmatprep.subr.bf16.mxu0 0
    %695 = vmatpush2.bf16.msra.mxu0 0
    %696 = vmatprep.subr.bf16.mxu0 0
    %697 = vmatpush2.bf16.msra.mxu0 0
    %698 = vmatprep.subr.bf16.mxu0 0
    %699 = vmatpush2.bf16.msra.mxu0 0
    %700 = vmatprep.subr.bf16.mxu0 0
    %701 = vmatpush2.bf16.msra.mxu0 0
    %702 = vmatprep.mubr.bf16.mxu0 0
    %703 = vmatmul.mubr.bf16.gmra.mxu0 %v668
    %v704 = vpop.f32.mrf.mxu0
    %v705 = vadd.f32 0.0, %v704
    %v706 = vpop.f32.mrf.mxu0
    %v707 = vpop.f32.mrf.mxu0
    %v708 = vadd.f32 0.0, %v707
    %v709 = vpop.f32.mrf.mxu0
    %710 = vdwg.mxu0
    %v711 = vld [vmem:[%s12] sm:$0xf]
    %v712 = vpack.c.bf16 %v708, %v705
    %vm713 = vcmask 130048
    %v715 = vsel %vm713, %v711, 0
    %717 = vmatprep.subr.bf16.mxu0 0
    %718 = vmatpush1.bf16.msra.mxu0 0
    %719 = vmatprep.subr.bf16.mxu0 0
    %720 = vmatpush1.bf16.msra.mxu0 0
    %721 = vmatprep.subr.bf16.mxu0 0
    %722 = vmatpush1.bf16.msra.mxu0 0
    %723 = vmatprep.subr.bf16.mxu0 0
    %724 = vmatpush1.bf16.msra.mxu0 0
    %725 = vmatprep.subr.bf16.mxu0 0
    %726 = vmatpush1.bf16.msra.mxu0 0
    %727 = vmatprep.subr.bf16.mxu0 0
    %728 = vmatpush1.bf16.msra.mxu0 0
    %729 = vmatprep.subr.bf16.mxu0 0
    %730 = vmatpush1.bf16.msra.mxu0 0
    %731 = vmatprep.subr.bf16.mxu0 0
    %732 = vmatpush1.bf16.msra.mxu0 %v712
    %733 = vmatprep.subr.bf16.mxu0 0
    %734 = vmatpush2.bf16.msra.mxu0 0
    %735 = vmatprep.subr.bf16.mxu0 0
    %736 = vmatpush2.bf16.msra.mxu0 0
    %737 = vmatprep.subr.bf16.mxu0 0
    %738 = vmatpush2.bf16.msra.mxu0 0
    %739 = vmatprep.subr.bf16.mxu0 0
    %740 = vmatpush2.bf16.msra.mxu0 0
    %741 = vmatprep.subr.bf16.mxu0 0
    %742 = vmatpush2.bf16.msra.mxu0 0
    %743 = vmatprep.subr.bf16.mxu0 0
    %744 = vmatpush2.bf16.msra.mxu0 0
    %745 = vmatprep.subr.bf16.mxu0 0
    %746 = vmatpush2.bf16.msra.mxu0 0
    %747 = vmatprep.subr.bf16.mxu0 0
    %748 = vmatpush2.bf16.msra.mxu0 0
    %749 = vmatprep.mubr.bf16.mxu0 0
    %750 = vmatmul.mubr.bf16.gmra.mxu0 %v715
    %v751 = vpop.f32.mrf.mxu0
    %v752 = vadd.f32 0.0, %v751
    %v753 = vpop.f32.mrf.mxu0
    %v754 = vpop.f32.mrf.mxu0
    %v755 = vpop.f32.mrf.mxu0
    %756 = vdwg.mxu0
    %v757 = vmul.f32 %v752, %v752
    %759 = vrot.lane.b32.xlu0 %v757, 32
    %v760 = vpop.permute.xlu0 %759
    %v762 = vsel %vm304, %v752, %v760
    %v763 = vsel %vm308, %v762, 0.0
    %v764 = vrot.slane %v763, 4
    %v765 = vadd.f32 %v763, %v764
    %v766 = vrot.slane %v765, 2
    %v767 = vadd.f32 %v765, %v766
    %v768 = vrot.slane %v767, 1
    %v769 = vadd.f32 %v767, %v768
    %v770 = vmul.f32 %v769, 0.125
    %v771 = vmul.f32 %v770, %v770
    %773 = vrot.lane.b32.xlu0 %v771, 32
    %v774 = vpop.permute.xlu0 %773
    %v776 = vsub.f32 %v770, %v774
    %v777 = vmax.f32 %v776, 0.0
    %v778 = vld [vmem:[%s14] sm:$0x1]
    %v779 = vadd.f32 %v777, 1e-05
    %v780 = vrsqrt.pop %v779
    %v783 = vunpack.c.l.s4 1966171168
    %v784 = vunpack.c.0.s8 %v783
    %v785 = vlaneseq
    %v786 = vshrl.u32 %v785, 7
    %v787 = vsub.s32 %v784, %v786
    %v788 = vrot.slane %v780, %v787
    %v790 = vunpack.c.l.s4 1966171168
    %v791 = vunpack.c.0.s8 %v790
    %v792 = vlaneseq
    %v793 = vshrl.u32 %v792, 7
    %v794 = vsub.s32 %v791, %v793
    %v795 = vrot.slane %v788, %v794
    %796 = vrot.lane.b32.xlu0 %v795, 96
    %v797 = vpop.permute.xlu0 %796
    %v799 = vmul.f32 %v778, %v797
    %v800 = vld [vmem:[%s15] sm:$0x1]
    %v801 = vmul.f32 %v770, %v799
    %v802 = vsub.f32 %v800, %v801
    %v804 = vlaneseq
    %v805 = vshrl.u32 %v804, 7
    %v806 = vsub.s32 0, %v805
    %v807 = vrot.slane %v799, %v806
    %v809 = vmul.f32 %v752, %v807
    %v811 = vlaneseq
    %v812 = vshrl.u32 %v811, 7
    %v813 = vsub.s32 0, %v812
    %v814 = vrot.slane %v802, %v813
    %v816 = vadd.f32 %v809, %v814
    %v817 = vtanh.pop %v816
    %v818 = vrot.slane %v817, 1
    %820 = vrot.lane.b32.xlu0 %v818, 32
    %v821 = vpop.permute.xlu0 %820
    %v823 = vsel %vm304, %v817, %v821
    %v824 = vld [vmem:[%s17] sm:$0xf]
    %v825 = vld [vmem:[%s17 + $0x4] sm:$0xf]
    %v826 = vld [vmem:[%s17 + $0x8] sm:$0xf]
    %v827 = vld [vmem:[%s17 + $0xc] sm:$0xf]
    %v828 = vld [vmem:[%s17 + $0x10] sm:$0xf]
    %v829 = vld [vmem:[%s17 + $0x14] sm:$0xf]
    %v830 = vld [vmem:[%s17 + $0x18] sm:$0xf]
    %v831 = vld [vmem:[%s17 + $0x1c] sm:$0xf]
    %v832 = vpack.c.bf16 %v823, %v823
    %v841 = vunpack.c.l.b16 %v824
    %v842 = vunpack.c.l.b16 %v825
    %v843 = vunpack.c.l.b16 %v826
    %v844 = vunpack.c.l.b16 %v827
    %v845 = vunpack.c.l.b16 %v828
    %v846 = vunpack.c.l.b16 %v829
    %v847 = vunpack.c.l.b16 %v830
    %v848 = vunpack.c.l.b16 %v831
    %v849 = vpack.c.b16 %v842, %v841
    %v850 = vpack.c.b16 %v844, %v843
    %v851 = vpack.c.b16 %v846, %v845
    %v852 = vpack.c.b16 %v848, %v847
    %v858 = vsel %vm308, %v832, 0
    %860 = vmatprep.subr.bf16.mxu0 0
    %861 = vmatpush1.bf16.msra.mxu0 0
    %862 = vmatprep.subr.bf16.mxu0 0
    %863 = vmatpush1.bf16.msra.mxu0 0
    %864 = vmatprep.subr.bf16.mxu0 0
    %865 = vmatpush1.bf16.msra.mxu0 0
    %866 = vmatprep.subr.bf16.mxu0 0
    %867 = vmatpush1.bf16.msra.mxu0 0
    %868 = vmatprep.subr.bf16.mxu0 0
    %869 = vmatpush1.bf16.msra.mxu0 %v852
    %870 = vmatprep.subr.bf16.mxu0 0
    %871 = vmatpush1.bf16.msra.mxu0 %v851
    %872 = vmatprep.subr.bf16.mxu0 0
    %873 = vmatpush1.bf16.msra.mxu0 %v850
    %874 = vmatprep.subr.bf16.mxu0 0
    %875 = vmatpush1.bf16.msra.mxu0 %v849
    %876 = vmatprep.subr.bf16.mxu0 0
    %877 = vmatpush2.bf16.msra.mxu0 0
    %878 = vmatprep.subr.bf16.mxu0 0
    %879 = vmatpush2.bf16.msra.mxu0 0
    %880 = vmatprep.subr.bf16.mxu0 0
    %881 = vmatpush2.bf16.msra.mxu0 0
    %882 = vmatprep.subr.bf16.mxu0 0
    %883 = vmatpush2.bf16.msra.mxu0 0
    %884 = vmatprep.subr.bf16.mxu0 0
    %885 = vmatpush2.bf16.msra.mxu0 0
    %886 = vmatprep.subr.bf16.mxu0 0
    %887 = vmatpush2.bf16.msra.mxu0 0
    %888 = vmatprep.subr.bf16.mxu0 0
    %889 = vmatpush2.bf16.msra.mxu0 0
    %890 = vmatprep.subr.bf16.mxu0 0
    %891 = vmatpush2.bf16.msra.mxu0 0
    %892 = vmatprep.mubr.bf16.mxu0 0
    %893 = vmatmul.mubr.bf16.gmra.mxu0 %v858
    %v894 = vpop.f32.mrf.mxu0
    %v895 = vadd.f32 0.0, %v894
    %v896 = vpop.f32.mrf.mxu0
    %v897 = vpop.f32.mrf.mxu0
    %v898 = vpop.f32.mrf.mxu0
    %899 = vdwg.mxu0
    %v900 = vld [vmem:[%s16] sm:$0xf]
    %v901 = vpack.c.bf16 %v895, %v895
    %vm902 = vcmask 64512
    %v904 = vsel %vm902, %v900, 0
    %v907 = vsel %vm237, %v901, 0
    %909 = vmatprep.subr.bf16.mxu0 0
    %910 = vmatpush1.bf16.msra.mxu0 0
    %911 = vmatprep.subr.bf16.mxu0 0
    %912 = vmatpush1.bf16.msra.mxu0 0
    %913 = vmatprep.subr.bf16.mxu0 0
    %914 = vmatpush1.bf16.msra.mxu0 0
    %915 = vmatprep.subr.bf16.mxu0 0
    %916 = vmatpush1.bf16.msra.mxu0 0
    %917 = vmatprep.subr.bf16.mxu0 0
    %918 = vmatpush1.bf16.msra.mxu0 0
    %919 = vmatprep.subr.bf16.mxu0 0
    %920 = vmatpush1.bf16.msra.mxu0 0
    %921 = vmatprep.subr.bf16.mxu0 0
    %922 = vmatpush1.bf16.msra.mxu0 0
    %923 = vmatprep.subr.bf16.mxu0 0
    %924 = vmatpush1.bf16.msra.mxu0 %v907
    %925 = vmatprep.subr.bf16.mxu0 0
    %926 = vmatpush2.bf16.msra.mxu0 0
    %927 = vmatprep.subr.bf16.mxu0 0
    %928 = vmatpush2.bf16.msra.mxu0 0
    %929 = vmatprep.subr.bf16.mxu0 0
    %930 = vmatpush2.bf16.msra.mxu0 0
    %931 = vmatprep.subr.bf16.mxu0 0
    %932 = vmatpush2.bf16.msra.mxu0 0
    %933 = vmatprep.subr.bf16.mxu0 0
    %934 = vmatpush2.bf16.msra.mxu0 0
    %935 = vmatprep.subr.bf16.mxu0 0
    %936 = vmatpush2.bf16.msra.mxu0 0
    %937 = vmatprep.subr.bf16.mxu0 0
    %938 = vmatpush2.bf16.msra.mxu0 0
    %939 = vmatprep.subr.bf16.mxu0 0
    %940 = vmatpush2.bf16.msra.mxu0 0
    %941 = vmatprep.mubr.bf16.mxu0 0
    %942 = vmatmul.mubr.bf16.gmra.mxu0 %v904
    %v943 = vpop.f32.mrf.mxu0
    %v944 = vadd.f32 0.0, %v943
    %v945 = vpop.f32.mrf.mxu0
    %v946 = vpop.f32.mrf.mxu0
    %v947 = vpop.f32.mrf.mxu0
    %948 = vdwg.mxu0
    %v949 = vmul.f32 %v944, %v944
    %951 = vrot.lane.b32.xlu0 %v949, 32
    %v952 = vpop.permute.xlu0 %951
    %v954 = vsel %vm304, %v944, %v952
    %v955 = vsel %vm308, %v954, 0.0
    %v956 = vrot.slane %v955, 4
    %v957 = vadd.f32 %v955, %v956
    %v958 = vrot.slane %v957, 2
    %v959 = vadd.f32 %v957, %v958
    %v960 = vrot.slane %v959, 1
    %v961 = vadd.f32 %v959, %v960
    %v962 = vmul.f32 %v961, 0.25
    %v963 = vmul.f32 %v962, %v962
    %965 = vrot.lane.b32.xlu0 %v963, 32
    %v966 = vpop.permute.xlu0 %965
    %v968 = vsub.f32 %v962, %v966
    %v969 = vmax.f32 %v968, 0.0
    %v970 = vld [vmem:[%s18] sm:$0x1]
    %v971 = vadd.f32 %v969, 1e-05
    %v972 = vrsqrt.pop %v971
    %v975 = vunpack.c.l.s4 1966171168
    %v976 = vunpack.c.0.s8 %v975
    %v977 = vlaneseq
    %v978 = vshrl.u32 %v977, 7
    %v979 = vsub.s32 %v976, %v978
    %v980 = vrot.slane %v972, %v979
    %v982 = vunpack.c.l.s4 1966171168
    %v983 = vunpack.c.0.s8 %v982
    %v984 = vlaneseq
    %v985 = vshrl.u32 %v984, 7
    %v986 = vsub.s32 %v983, %v985
    %v987 = vrot.slane %v980, %v986
    %988 = vrot.lane.b32.xlu0 %v987, 96
    %v989 = vpop.permute.xlu0 %988
    %v991 = vmul.f32 %v970, %v989
    %v992 = vld [vmem:[%s19] sm:$0x1]
    %v993 = vmul.f32 %v962, %v991
    %v994 = vsub.f32 %v992, %v993
    %v996 = vlaneseq
    %v997 = vshrl.u32 %v996, 7
    %v998 = vsub.s32 0, %v997
    %v999 = vrot.slane %v991, %v998
    %v1001 = vmul.f32 %v944, %v999
    %v1003 = vlaneseq
    %v1004 = vshrl.u32 %v1003, 7
    %v1005 = vsub.s32 0, %v1004
    %v1006 = vrot.slane %v994, %v1005
    %v1008 = vadd.f32 %v1001, %v1006
    %v1009 = vtanh.pop %v1008
    %v1010 = vrot.slane %v1009, 1
    %1012 = vrot.lane.b32.xlu0 %v1010, 32
    %v1013 = vpop.permute.xlu0 %1012
    %v1015 = vsel %vm304, %v1009, %v1013
    %v1016 = vld [vmem:[%s21] sm:$0xf]
    %v1017 = vld [vmem:[%s21 + $0x4] sm:$0xf]
    %v1018 = vld [vmem:[%s21 + $0x8] sm:$0xf]
    %v1019 = vld [vmem:[%s21 + $0xc] sm:$0xf]
    %v1020 = vld [vmem:[%s21 + $0x10] sm:$0xf]
    %v1021 = vld [vmem:[%s21 + $0x14] sm:$0xf]
    %v1022 = vld [vmem:[%s21 + $0x18] sm:$0xf]
    %v1023 = vld [vmem:[%s21 + $0x1c] sm:$0xf]
    %v1024 = vpack.c.bf16 %v1015, %v1015
    %v1033 = vunpack.c.l.b16 %v1016
    %v1034 = vunpack.c.l.b16 %v1017
    %v1035 = vunpack.c.l.b16 %v1018
    %v1036 = vunpack.c.l.b16 %v1019
    %v1037 = vunpack.c.l.b16 %v1020
    %v1038 = vunpack.c.l.b16 %v1021
    %v1039 = vunpack.c.l.b16 %v1022
    %v1040 = vunpack.c.l.b16 %v1023
    %v1041 = vpack.c.b16 %v1034, %v1033
    %v1042 = vpack.c.b16 %v1036, %v1035
    %v1043 = vpack.c.b16 %v1038, %v1037
    %v1044 = vpack.c.b16 %v1040, %v1039
    %v1050 = vsel %vm308, %v1024, 0
    %1052 = vmatprep.subr.bf16.mxu0 0
    %1053 = vmatpush1.bf16.msra.mxu0 0
    %1054 = vmatprep.subr.bf16.mxu0 0
    %1055 = vmatpush1.bf16.msra.mxu0 0
    %1056 = vmatprep.subr.bf16.mxu0 0
    %1057 = vmatpush1.bf16.msra.mxu0 0
    %1058 = vmatprep.subr.bf16.mxu0 0
    %1059 = vmatpush1.bf16.msra.mxu0 0
    %1060 = vmatprep.subr.bf16.mxu0 0
    %1061 = vmatpush1.bf16.msra.mxu0 %v1044
    %1062 = vmatprep.subr.bf16.mxu0 0
    %1063 = vmatpush1.bf16.msra.mxu0 %v1043
    %1064 = vmatprep.subr.bf16.mxu0 0
    %1065 = vmatpush1.bf16.msra.mxu0 %v1042
    %1066 = vmatprep.subr.bf16.mxu0 0
    %1067 = vmatpush1.bf16.msra.mxu0 %v1041
    %1068 = vmatprep.subr.bf16.mxu0 0
    %1069 = vmatpush2.bf16.msra.mxu0 0
    %1070 = vmatprep.subr.bf16.mxu0 0
    %1071 = vmatpush2.bf16.msra.mxu0 0
    %1072 = vmatprep.subr.bf16.mxu0 0
    %1073 = vmatpush2.bf16.msra.mxu0 0
    %1074 = vmatprep.subr.bf16.mxu0 0
    %1075 = vmatpush2.bf16.msra.mxu0 0
    %1076 = vmatprep.subr.bf16.mxu0 0
    %1077 = vmatpush2.bf16.msra.mxu0 0
    %1078 = vmatprep.subr.bf16.mxu0 0
    %1079 = vmatpush2.bf16.msra.mxu0 0
    %1080 = vmatprep.subr.bf16.mxu0 0
    %1081 = vmatpush2.bf16.msra.mxu0 0
    %1082 = vmatprep.subr.bf16.mxu0 0
    %1083 = vmatpush2.bf16.msra.mxu0 0
    %1084 = vmatprep.mubr.bf16.mxu0 0
    %1085 = vmatmul.mubr.bf16.gmra.mxu0 %v1050
    %v1086 = vpop.f32.mrf.mxu0
    %v1087 = vadd.f32 0.0, %v1086
    %v1088 = vpop.f32.mrf.mxu0
    %v1089 = vpop.f32.mrf.mxu0
    %v1090 = vpop.f32.mrf.mxu0
    %1091 = vdwg.mxu0
    %v1092 = vld [vmem:[%s20] sm:$0xf]
    %v1093 = vpack.c.bf16 %v1087, %v1087
    %v1095 = vsel %vm902, %v1092, 0
    %v1098 = vsel %vm237, %v1093, 0
    %1100 = vmatprep.subr.bf16.mxu0 0
    %1101 = vmatpush1.bf16.msra.mxu0 0
    %1102 = vmatprep.subr.bf16.mxu0 0
    %1103 = vmatpush1.bf16.msra.mxu0 0
    %1104 = vmatprep.subr.bf16.mxu0 0
    %1105 = vmatpush1.bf16.msra.mxu0 0
    %1106 = vmatprep.subr.bf16.mxu0 0
    %1107 = vmatpush1.bf16.msra.mxu0 0
    %1108 = vmatprep.subr.bf16.mxu0 0
    %1109 = vmatpush1.bf16.msra.mxu0 0
    %1110 = vmatprep.subr.bf16.mxu0 0
    %1111 = vmatpush1.bf16.msra.mxu0 0
    %1112 = vmatprep.subr.bf16.mxu0 0
    %1113 = vmatpush1.bf16.msra.mxu0 0
    %1114 = vmatprep.subr.bf16.mxu0 0
    %1115 = vmatpush1.bf16.msra.mxu0 %v1098
    %1116 = vmatprep.subr.bf16.mxu0 0
    %1117 = vmatpush2.bf16.msra.mxu0 0
    %1118 = vmatprep.subr.bf16.mxu0 0
    %1119 = vmatpush2.bf16.msra.mxu0 0
    %1120 = vmatprep.subr.bf16.mxu0 0
    %1121 = vmatpush2.bf16.msra.mxu0 0
    %1122 = vmatprep.subr.bf16.mxu0 0
    %1123 = vmatpush2.bf16.msra.mxu0 0
    %1124 = vmatprep.subr.bf16.mxu0 0
    %1125 = vmatpush2.bf16.msra.mxu0 0
    %1126 = vmatprep.subr.bf16.mxu0 0
    %1127 = vmatpush2.bf16.msra.mxu0 0
    %1128 = vmatprep.subr.bf16.mxu0 0
    %1129 = vmatpush2.bf16.msra.mxu0 0
    %1130 = vmatprep.subr.bf16.mxu0 0
    %1131 = vmatpush2.bf16.msra.mxu0 0
    %1132 = vmatprep.mubr.bf16.mxu0 0
    %1133 = vmatmul.mubr.bf16.gmra.mxu0 %v1095
    %v1134 = vpop.f32.mrf.mxu0
    %v1135 = vadd.f32 0.0, %v1134
    %v1136 = vpop.f32.mrf.mxu0
    %v1137 = vpop.f32.mrf.mxu0
    %v1138 = vpop.f32.mrf.mxu0
    %1139 = vdwg.mxu0
    %v1140 = vmul.f32 %v1135, %v1135
    %1142 = vrot.lane.b32.xlu0 %v1140, 32
    %v1143 = vpop.permute.xlu0 %1142
    %v1145 = vsel %vm304, %v1135, %v1143
    %v1146 = vsel %vm308, %v1145, 0.0
    %v1147 = vrot.slane %v1146, 4
    %v1148 = vadd.f32 %v1146, %v1147
    %v1149 = vrot.slane %v1148, 2
    %v1150 = vadd.f32 %v1148, %v1149
    %v1151 = vrot.slane %v1150, 1
    %v1152 = vadd.f32 %v1150, %v1151
    %v1153 = vmul.f32 %v1152, 0.5
    %v1154 = vmul.f32 %v1153, %v1153
    %1156 = vrot.lane.b32.xlu0 %v1154, 32
    %v1157 = vpop.permute.xlu0 %1156
    %v1159 = vsub.f32 %v1153, %v1157
    %v1160 = vmax.f32 %v1159, 0.0
    %v1161 = vld [vmem:[%s22] sm:$0x1]
    %v1162 = vadd.f32 %v1160, 1e-05
    %v1163 = vrsqrt.pop %v1162
    %v1166 = vunpack.c.l.s4 1966171168
    %v1167 = vunpack.c.0.s8 %v1166
    %v1168 = vlaneseq
    %v1169 = vshrl.u32 %v1168, 7
    %v1170 = vsub.s32 %v1167, %v1169
    %v1171 = vrot.slane %v1163, %v1170
    %v1173 = vunpack.c.l.s4 1966171168
    %v1174 = vunpack.c.0.s8 %v1173
    %v1175 = vlaneseq
    %v1176 = vshrl.u32 %v1175, 7
    %v1177 = vsub.s32 %v1174, %v1176
    %v1178 = vrot.slane %v1171, %v1177
    %1179 = vrot.lane.b32.xlu0 %v1178, 96
    %v1180 = vpop.permute.xlu0 %1179
    %v1182 = vmul.f32 %v1161, %v1180
    %v1183 = vld [vmem:[%s23] sm:$0x1]
    %v1184 = vmul.f32 %v1153, %v1182
    %v1185 = vsub.f32 %v1183, %v1184
    %v1187 = vlaneseq
    %v1188 = vshrl.u32 %v1187, 7
    %v1189 = vsub.s32 0, %v1188
    %v1190 = vrot.slane %v1182, %v1189
    %v1192 = vmul.f32 %v1135, %v1190
    %v1194 = vlaneseq
    %v1195 = vshrl.u32 %v1194, 7
    %v1196 = vsub.s32 0, %v1195
    %v1197 = vrot.slane %v1185, %v1196
    %v1199 = vadd.f32 %v1192, %v1197
    %v1200 = vtanh.pop %v1199
    %v1201 = vld [vmem:[%s2] sm:$0xf]
    %v1202 = vld [vmem:[%s2 + $0x4] sm:$0xf]
    %v1203 = vld [vmem:[%s2 + $0x8] sm:$0xf]
    %v1204 = vld [vmem:[%s2 + $0xc] sm:$0xf]
    %v1205 = vpack.c.bf16 %v1200, %v1200
    %v1206 = vld [vmem:[%s3] sm:$0x1]
    %v1208 = vlaneseq
    %v1209 = vshrl.u32 %v1208, 7
    %v1210 = vsub.s32 0, %v1209
    %v1211 = vrot.slane %v1206, %v1210
    %v1217 = vunpack.c.l.b16 %v1201
    %v1218 = vunpack.c.l.b16 %v1202
    %v1219 = vunpack.c.l.b16 %v1203
    %v1220 = vunpack.c.l.b16 %v1204
    %v1221 = vpack.c.b16 %v1218, %v1217
    %v1222 = vpack.c.b16 %v1220, %v1219
    %v1226 = vsel %vm304, %v1205, 0
    %1228 = vmatprep.subr.bf16.mxu0 0
    %1229 = vmatpush1.bf16.msra.mxu0 0
    %1230 = vmatprep.subr.bf16.mxu0 0
    %1231 = vmatpush1.bf16.msra.mxu0 0
    %1232 = vmatprep.subr.bf16.mxu0 0
    %1233 = vmatpush1.bf16.msra.mxu0 0
    %1234 = vmatprep.subr.bf16.mxu0 0
    %1235 = vmatpush1.bf16.msra.mxu0 0
    %1236 = vmatprep.subr.bf16.mxu0 0
    %1237 = vmatpush1.bf16.msra.mxu0 0
    %1238 = vmatprep.subr.bf16.mxu0 0
    %1239 = vmatpush1.bf16.msra.mxu0 0
    %1240 = vmatprep.subr.bf16.mxu0 0
    %1241 = vmatpush1.bf16.msra.mxu0 %v1222
    %1242 = vmatprep.subr.bf16.mxu0 0
    %1243 = vmatpush1.bf16.msra.mxu0 %v1221
    %1244 = vmatprep.subr.bf16.mxu0 0
    %1245 = vmatpush2.bf16.msra.mxu0 0
    %1246 = vmatprep.subr.bf16.mxu0 0
    %1247 = vmatpush2.bf16.msra.mxu0 0
    %1248 = vmatprep.subr.bf16.mxu0 0
    %1249 = vmatpush2.bf16.msra.mxu0 0
    %1250 = vmatprep.subr.bf16.mxu0 0
    %1251 = vmatpush2.bf16.msra.mxu0 0
    %1252 = vmatprep.subr.bf16.mxu0 0
    %1253 = vmatpush2.bf16.msra.mxu0 0
    %1254 = vmatprep.subr.bf16.mxu0 0
    %1255 = vmatpush2.bf16.msra.mxu0 0
    %1256 = vmatprep.subr.bf16.mxu0 0
    %1257 = vmatpush2.bf16.msra.mxu0 0
    %1258 = vmatprep.subr.bf16.mxu0 0
    %1259 = vmatpush2.bf16.msra.mxu0 0
    %1260 = vmatprep.mubr.bf16.mxu0 0
    %1261 = vmatmul.mubr.bf16.gmra.mxu0 %v1226
    %v1262 = vpop.f32.mrf.mxu0
    %v1263 = vadd.f32 %v1211, %v1262
    %v1264 = vpop.f32.mrf.mxu0
    %v1265 = vpop.f32.mrf.mxu0
    %v1266 = vpop.f32.mrf.mxu0
    %1267 = vdwg.mxu0
    %1268 = vst [vmem:[#allocation2] sm:$0xff] %v1263
    // Predicated region
    $region98: #{tpu_custom_call.1} parent=1 // pred_check
      _
    $region99: #{tpu_custom_call.1} parent=1 // pred_check_branch
      %1270 = sbr.rel (0) target = $region101
    $region100: #{tpu_custom_call.1} parent=1 // pred_region
      %s1272 = ssub.s32 128, 128
      %1273 = vsyncadd [#allocation3], %s1272
      %s1275 = sshll.u32 [#allocation2], 4
      %s1276 = int_to_ptr.vmem [resolvable:$true] %s1275
      %1278 = dma.vmem_to_hbm [thread:$0]  %s1276, 128, %s24, [#allocation3]
    $region101: #{tpu_custom_call.1} parent=1 // pred_fallthru
      _
    // Predicated region
    $region102: #{tpu_custom_call.1} parent=1 // pred_check
      _
    $region103: #{tpu_custom_call.1} parent=1 // pred_check_branch
      %1280 = sbr.rel (0) target = $region105
    $region104: #{tpu_custom_call.1} parent=1 // pred_region
      %1281 = dma.done [#allocation3], 128
    $region105: #{tpu_custom_call.1} parent=1 // pred_fallthru
      _
    %1282 = vsyncpa [#allocation3], 1

</llo_original>
